<compile_context>
chip_gen: v5e
topology: v5e:2x2
jax: 0.10.0
libtpu: 0.0.40
codegen_flags: <defaults>
</compile_context>

<pallas_src>
import functools

import jax
import jax.numpy as jnp
from jax.experimental import pallas as pl
from jax.experimental.pallas import tpu as pltpu


def _tile_logits(idx, table_ref, w_ref, b_ref, tn, v):
    """One-hot MXU gather + linear head for one token tile (bf16 MXU, f32 acc)."""
    vocab_iota = jax.lax.broadcasted_iota(jnp.int32, (tn, v), 1)       # (tn, V)
    onehot = (vocab_iota == idx).astype(jnp.bfloat16)                  # 0/1 exact in bf16
    emb = jnp.dot(onehot, table_ref[...],                              # (tn, E) f32
                  preferred_element_type=jnp.float32)
    logits = jnp.dot(emb.astype(jnp.bfloat16),                         # lossless recast
                     w_ref[...],
                     preferred_element_type=jnp.float32)               # (tn, V) f32
    return logits + b_ref[...], vocab_iota


def bigram_loss_kernel(idx_ref, tgt_ref, table_ref, w_ref, b_ref,
                       logits_ref, loss_ref, *, total_tokens):
    i = pl.program_id(0)
    tn, v = logits_ref.shape

    idx = idx_ref[...]                                                 # (tn, 1) int32
    tgt = tgt_ref[...]                                                 # (tn, 1) int32
    logits, vocab_iota = _tile_logits(idx, table_ref, w_ref, b_ref, tn, v)
    logits_ref[...] = logits

    # Cross-entropy per token, masked for padded rows past the real token count.
    row = jax.lax.broadcasted_iota(jnp.int32, (tn, 1), 0) + i * tn     # global row ids
    valid = (row < total_tokens).astype(jnp.float32)                   # (tn, 1)
    m = jnp.max(logits, axis=-1, keepdims=True)
    lse = m + jnp.log(jnp.sum(jnp.exp(logits - m), axis=-1, keepdims=True))
    sel = jnp.sum(jnp.where(vocab_iota == tgt, logits, 0.0),
                  axis=-1, keepdims=True)
    tile_sum = jnp.sum((lse - sel) * valid)

    # Lane-dense per-tile partial (independent block per grid step -> safe under
    # "parallel" megacore semantics); final mean is taken in the wrapper.
    loss_ref[...] = jnp.full(loss_ref.shape, tile_sum, jnp.float32)


def bigram_logits_kernel(idx_ref, table_ref, w_ref, b_ref, logits_ref):
    tn, v = logits_ref.shape
    logits, _ = _tile_logits(idx_ref[...], table_ref, w_ref, b_ref, tn, v)
    logits_ref[...] = logits


def bigram_forward(idx, emb_table, w, b, targets=None, *, tile_tokens=128):
    """Pallas forward pass for BigramLanguageModel.

    Mirrors the PyTorch module: returns (logits, loss).  When `targets` is given
    the logits come back flattened to (B*T, V) (as torch's .view does) and loss is
    the mean cross-entropy; otherwise logits are (B, T, V) and loss is None.
    """
    B, T = idx.shape
    V, E = emb_table.shape
    N = B * T
    num_tiles = (N + tile_tokens - 1) // tile_tokens
    N_pad = num_tiles * tile_tokens

    idx_flat = jnp.pad(idx.reshape(N, 1).astype(jnp.int32),
                       ((0, N_pad - N), (0, 0)))

    # Cast weights to bf16 once (outside the grid) -> resident VMEM tiles are half
    # the size and the kernel body does no per-step casts of the big operands.
    table_bf = emb_table.astype(jnp.bfloat16)
    w_bf = w.astype(jnp.bfloat16)
    b_f32 = b.astype(jnp.float32)

    compiler_params = pltpu.CompilerParams(
        dimension_semantics=("parallel",),          # token tiles are independent
    )

    weight_specs = [
        pl.BlockSpec((V, E), lambda i: (0, 0)),     # embedding table (resident)
        pl.BlockSpec((E, V), lambda i: (0, 0)),     # linear weight^T (resident)
        pl.BlockSpec((1, V), lambda i: (0, 0)),     # linear bias (resident)
    ]
    tok_spec = pl.BlockSpec((tile_tokens, 1), lambda i: (i, 0))
    logits_spec = pl.BlockSpec((tile_tokens, V), lambda i: (i, 0))

    if targets is None:
        # Inference path: no CE math, no dummy target/loss traffic at all.
        logits_flat = pl.pallas_call(
            bigram_logits_kernel,
            out_shape=jax.ShapeDtypeStruct((N_pad, V), jnp.float32),
            grid_spec=pltpu.PrefetchScalarGridSpec(
                num_scalar_prefetch=0,
                grid=(num_tiles,),
                in_specs=[tok_spec] + weight_specs,
                out_specs=logits_spec,
            ),
            compiler_params=compiler_params,
        )(idx_flat, table_bf, w_bf, b_f32)
        return logits_flat[:N].reshape(B, T, V), None

    tgt_flat = jnp.pad(targets.reshape(N, 1).astype(jnp.int32),
                       ((0, N_pad - N), (0, 0)))

    logits_flat, loss_partials = pl.pallas_call(
        functools.partial(bigram_loss_kernel, total_tokens=N),
        out_shape=(
            jax.ShapeDtypeStruct((N_pad, V), jnp.float32),
            jax.ShapeDtypeStruct((num_tiles, 1, 128), jnp.float32),
        ),
        grid_spec=pltpu.PrefetchScalarGridSpec(
            num_scalar_prefetch=0,
            grid=(num_tiles,),
            in_specs=[tok_spec, tok_spec] + weight_specs,
            out_specs=[
                logits_spec,
                pl.BlockSpec((1, 1, 128), lambda i: (i, 0, 0)),  # per-tile loss sum
            ],
        ),
        compiler_params=compiler_params,
    )(idx_flat, tgt_flat, table_bf, w_bf, b_f32)

    loss = jnp.sum(loss_partials[:, 0, 0]) / jnp.float32(N)
    logits = logits_flat[:N]                         # (B*T, V), matching torch .view
    return logits, loss


def reference_forward(idx, emb_table, w, b, targets):
    """Pure-JAX reference mirroring the PyTorch forward (same bf16 MXU operands)."""
    table_bf = emb_table.astype(jnp.bfloat16)
    emb = table_bf[idx]                                        # exact one-hot select
    logits = jnp.dot(emb, w.astype(jnp.bfloat16),
                     preferred_element_type=jnp.float32) + b[0]
    B, T, V = logits.shape
    lf = logits.reshape(B * T, V)
    tf = targets.reshape(B * T)
    lse = jax.nn.logsumexp(lf, axis=-1)
    sel = jnp.take_along_axis(lf, tf[:, None], axis=-1)[:, 0]
    loss = jnp.mean(lse - sel)
    return logits, loss


if __name__ == "__main__":
    # Small, MXU/lane-friendly synthetic sizes (module default embedding_dim=256,
    # vocab shrunk deterministically to 512 for this synthetic test).
    V, E = 512, 256

    key = jax.random.PRNGKey(0)
    k_tab, k_w, k_b, k_idx, k_tgt, k_idx2, k_tgt2 = jax.random.split(key, 7)

    emb_table = jax.random.normal(k_tab, (V, E), jnp.float32)           # nn.Embedding weight
    w = jax.random.normal(k_w, (E, V), jnp.float32) / jnp.sqrt(E)       # nn.Linear weight^T
    b = jax.random.normal(k_b, (1, V), jnp.float32) * 0.01              # nn.Linear bias

    # --- test 1: multi-tile path (2 token tiles, parallel grid, partial-loss reduce)
    B, T = 2, 128
    idx = jax.random.randint(k_idx, (B, T), 0, V, jnp.int32)
    targets = jax.random.randint(k_tgt, (B, T), 0, V, jnp.int32)

    logits, loss = bigram_forward(idx, emb_table, w, b, targets, tile_tokens=128)
    logits = jax.block_until_ready(logits)
    loss = jax.block_until_ready(loss)

    ref_logits, ref_loss = reference_forward(idx, emb_table, w, b, targets)
    assert logits.shape == (B * T, V)                                   # torch .view shape
    assert jnp.allclose(logits.reshape(B, T, V), ref_logits, atol=2e-3, rtol=2e-3)
    assert jnp.allclose(loss, ref_loss, atol=2e-3, rtol=2e-3)

    # --- test 2: padded tile path (N=20 real tokens inside a 128-token tile)
    B2, T2 = 2, 10
    idx2 = jax.random.randint(k_idx2, (B2, T2), 0, V, jnp.int32)
    targets2 = jax.random.randint(k_tgt2, (B2, T2), 0, V, jnp.int32)
    logits2, loss2 = bigram_forward(idx2, emb_table, w, b, targets2, tile_tokens=128)
    jax.block_until_ready(loss2)
    ref_logits2, ref_loss2 = reference_forward(idx2, emb_table, w, b, targets2)
    assert logits2.shape == (B2 * T2, V)
    assert jnp.allclose(logits2.reshape(B2, T2, V), ref_logits2, atol=2e-3, rtol=2e-3)
    assert jnp.allclose(loss2, ref_loss2, atol=2e-3, rtol=2e-3)

    # --- test 3: targets=None path (loss is None, logits only), as in the module.
    logits_only, no_loss = bigram_forward(idx, emb_table, w, b, None, tile_tokens=128)
    jax.block_until_ready(logits_only)
    assert no_loss is None
    assert logits_only.shape == (B, T, V)
    assert jnp.allclose(logits_only, ref_logits, atol=2e-3, rtol=2e-3)

    # TODO(synk): `generate` uses a host-side torch.multinomial sampling loop;
    # autoregressive sampling is out of scope for this forward-pass kernel.

    print("KERNEL_OK")
</pallas_src>

<mosaic_0001>
module attributes {stable_mosaic.version = 11 : i64} {
  func.func @bigram_loss_kernel(%arg0: i32, %arg1: memref<128x1xi32, #tpu.memory_space<vmem>>, %arg2: memref<128x1xi32, #tpu.memory_space<vmem>>, %arg3: memref<512x256xbf16, #tpu.memory_space<vmem>>, %arg4: memref<256x512xbf16, #tpu.memory_space<vmem>>, %arg5: memref<1x512xf32, #tpu.memory_space<vmem>>, %arg6: memref<128x512xf32, #tpu.memory_space<vmem>>, %arg7: memref<1x1x128xf32, #tpu.memory_space<vmem>>) attributes {dimension_semantics = [#tpu.dimension_semantics<parallel>], iteration_bounds = array<i64: 2>, scalar_prefetch = 0 : i64, scratch_operands = 0 : i64, tpu.core_type = #tpu.core_type<tc>, window_params = [{transform_indices = @transform_0, window_bounds = array<i64: 128, 1>}, {transform_indices = @transform_1, window_bounds = array<i64: 128, 1>}, {pipeline_mode = #tpu.pipeline_mode<synchronous>, transform_indices = @transform_2, window_bounds = array<i64: 512, 256>}, {pipeline_mode = #tpu.pipeline_mode<synchronous>, transform_indices = @transform_3, window_bounds = array<i64: 256, 512>}, {pipeline_mode = #tpu.pipeline_mode<synchronous>, transform_indices = @transform_4, window_bounds = array<i64: 1, 512>}, {transform_indices = @transform_5, window_bounds = array<i64: 128, 512>}, {transform_indices = @transform_6, window_bounds = array<i64: 1, 1, 128>}]} {
    %c0 = arith.constant 0 : index
    %c0_0 = arith.constant 0 : index
    %0 = vector.load %arg1[%c0, %c0_0] : memref<128x1xi32, #tpu.memory_space<vmem>>, vector<128x1xi32>
    %c0_1 = arith.constant 0 : index
    %c0_2 = arith.constant 0 : index
    %1 = vector.load %arg2[%c0_1, %c0_2] : memref<128x1xi32, #tpu.memory_space<vmem>>, vector<128x1xi32>
    %2 = tpu.iota {dimensions = array<i32: 1>} : vector<128x512xi32>
    %3 = vector.broadcast %0 : vector<128x1xi32> to vector<128x512xi32>
    %4 = arith.cmpi eq, %2, %3 : vector<128x512xi32>
    %5 = arith.extui %4 : vector<128x512xi1> to vector<128x512xi32>
    %6 = arith.sitofp %5 : vector<128x512xi32> to vector<128x512xf32>
    %7 = arith.truncf %6 : vector<128x512xf32> to vector<128x512xbf16>
    %c0_3 = arith.constant 0 : index
    %c0_4 = arith.constant 0 : index
    %8 = vector.load %arg3[%c0_3, %c0_4] : memref<512x256xbf16, #tpu.memory_space<vmem>>, vector<512x256xbf16>
    %cst = arith.constant dense<0.000000e+00> : vector<128x256xf32>
    %9 = tpu.matmul %7, %8, %cst {dimension_numbers = #tpu.dot_dimension_numbers<[1], [0], [0], [1], [0, 0, 1, 1], [], []>} : vector<128x512xbf16>, vector<512x256xbf16>, vector<128x256xf32> -> vector<128x256xf32>
    %10 = arith.truncf %9 : vector<128x256xf32> to vector<128x256xbf16>
    %c0_5 = arith.constant 0 : index
    %c0_6 = arith.constant 0 : index
    %11 = vector.load %arg4[%c0_5, %c0_6] : memref<256x512xbf16, #tpu.memory_space<vmem>>, vector<256x512xbf16>
    %cst_7 = arith.constant dense<0.000000e+00> : vector<128x512xf32>
    %12 = tpu.matmul %10, %11, %cst_7 {dimension_numbers = #tpu.dot_dimension_numbers<[1], [0], [0], [1], [0, 0, 1, 1], [], []>} : vector<128x256xbf16>, vector<256x512xbf16>, vector<128x512xf32> -> vector<128x512xf32>
    %c0_8 = arith.constant 0 : index
    %c0_9 = arith.constant 0 : index
    %13 = vector.load %arg5[%c0_8, %c0_9] : memref<1x512xf32, #tpu.memory_space<vmem>>, vector<1x512xf32>
    %14 = vector.broadcast %13 : vector<1x512xf32> to vector<128x512xf32>
    %15 = arith.addf %12, %14 : vector<128x512xf32>
    %c0_10 = arith.constant 0 : index
    %c0_11 = arith.constant 0 : index
    %16 = vector.load %arg6[%c0_10, %c0_11] : memref<128x512xf32, #tpu.memory_space<vmem>>, vector<128x512xf32>
    tpu.vector_store %arg6[%c0_10, %c0_11], %15 {strides = array<i32>} : memref<128x512xf32, #tpu.memory_space<vmem>>, vector<128x512xf32>,
    %17 = tpu.iota {dimensions = array<i32: 0>} : vector<128x1xi32>
    %c128_i32 = arith.constant 128 : i32
    %18 = arith.muli %arg0, %c128_i32 : i32
    %19 = vector.broadcast %18 : i32 to vector<128x1xi32>
    %20 = arith.addi %17, %19 : vector<128x1xi32>
    %c256_i32 = arith.constant 256 : i32
    %21 = vector.broadcast %c256_i32 : i32 to vector<128x1xi32>
    %22 = arith.cmpi slt, %20, %21 : vector<128x1xi32>
    %23 = arith.extui %22 : vector<128x1xi1> to vector<128x1xi32>
    %24 = arith.sitofp %23 : vector<128x1xi32> to vector<128x1xf32>
    %cst_12 = arith.constant dense<0xFF800000> : vector<128xf32>
    %25 = vector.multi_reduction <maximumf>, %15, %cst_12 [1] : vector<128x512xf32> to vector<128xf32>
    %26 = vector.shape_cast %25 : vector<128xf32> to vector<128x1xf32>
    %27 = vector.broadcast %26 : vector<128x1xf32> to vector<128x512xf32>
    %28 = arith.subf %15, %27 : vector<128x512xf32>
    %29 = math.exp %28 : vector<128x512xf32>
    %cst_13 = arith.constant dense<0.000000e+00> : vector<128xf32>
    %30 = vector.multi_reduction <add>, %29, %cst_13 [1] : vector<128x512xf32> to vector<128xf32>
    %31 = vector.shape_cast %30 : vector<128xf32> to vector<128x1xf32>
    %32 = math.log %31 : vector<128x1xf32>
    %33 = arith.addf %26, %32 : vector<128x1xf32>
    %34 = vector.broadcast %1 : vector<128x1xi32> to vector<128x512xi32>
    %35 = arith.cmpi eq, %2, %34 : vector<128x512xi32>
    %cst_14 = arith.constant 0.000000e+00 : f32
    %36 = vector.broadcast %cst_14 : f32 to vector<128x512xf32>
    %37 = arith.select %35, %15, %36 : vector<128x512xi1>, vector<128x512xf32>
    %cst_15 = arith.constant dense<0.000000e+00> : vector<128xf32>
    %38 = vector.multi_reduction <add>, %37, %cst_15 [1] : vector<128x512xf32> to vector<128xf32>
    %39 = vector.shape_cast %38 : vector<128xf32> to vector<128x1xf32>
    %40 = arith.subf %33, %39 : vector<128x1xf32>
    %41 = arith.mulf %40, %24 : vector<128x1xf32>
    %42 = vector.shape_cast %41 : vector<128x1xf32> to vector<1x128x1xf32>
    %cst_16 = arith.constant dense<0.000000e+00> : vector<1xf32>
    %43 = vector.multi_reduction <add>, %42, %cst_16 [1, 2] : vector<1x128x1xf32> to vector<1xf32>
    %44 = vector.shape_cast %43 : vector<1xf32> to vector<1x1x1xf32>
    %45 = vector.extract %44[0, 0, 0] : f32 from vector<1x1x1xf32>
    %46 = vector.broadcast %45 : f32 to vector<1x1x128xf32>
    %c0_17 = arith.constant 0 : index
    %c0_18 = arith.constant 0 : index
    %c0_19 = arith.constant 0 : index
    %47 = vector.load %arg7[%c0_17, %c0_18, %c0_19] : memref<1x1x128xf32, #tpu.memory_space<vmem>>, vector<1x1x128xf32>
    tpu.vector_store %arg7[%c0_17, %c0_18, %c0_19], %46 {strides = array<i32>} : memref<1x1x128xf32, #tpu.memory_space<vmem>>, vector<1x1x128xf32>,
    return
  }
  func.func @transform_0(%arg0: i32) -> (i32, i32) {
    %c0_i32 = arith.constant 0 : i32
    %c0_i32_0 = arith.constant 0 : i32
    return %arg0, %c0_i32 : i32, i32
  }
  func.func @transform_1(%arg0: i32) -> (i32, i32) {
    %c0_i32 = arith.constant 0 : i32
    %c0_i32_0 = arith.constant 0 : i32
    return %arg0, %c0_i32 : i32, i32
  }
  func.func @transform_2(%arg0: i32) -> (i32, i32) {
    %c0_i32 = arith.constant 0 : i32
    %c0_i32_0 = arith.constant 0 : i32
    %c0_i32_1 = arith.constant 0 : i32
    return %c0_i32, %c0_i32_0 : i32, i32
  }
  func.func @transform_3(%arg0: i32) -> (i32, i32) {
    %c0_i32 = arith.constant 0 : i32
    %c0_i32_0 = arith.constant 0 : i32
    %c0_i32_1 = arith.constant 0 : i32
    return %c0_i32, %c0_i32_0 : i32, i32
  }
  func.func @transform_4(%arg0: i32) -> (i32, i32) {
    %c0_i32 = arith.constant 0 : i32
    %c0_i32_0 = arith.constant 0 : i32
    %c0_i32_1 = arith.constant 0 : i32
    return %c0_i32, %c0_i32_0 : i32, i32
  }
  func.func @transform_5(%arg0: i32) -> (i32, i32) {
    %c0_i32 = arith.constant 0 : i32
    %c0_i32_0 = arith.constant 0 : i32
    return %arg0, %c0_i32 : i32, i32
  }
  func.func @transform_6(%arg0: i32) -> (i32, i32, i32) {
    %c0_i32 = arith.constant 0 : i32
    %c0_i32_0 = arith.constant 0 : i32
    %c0_i32_1 = arith.constant 0 : i32
    return %arg0, %c0_i32, %c0_i32_0 : i32, i32, i32
  }
}

</mosaic_0001>

<llo_original>
// kernel: tpu_custom_call.1
$region0: #{tpu_custom_call.1}
  #allocation0 [shape = 'u32[]', space=smem, size = 0x4, offset = 0x4, fixed_abs, tag = 'smem constant byte address 0x4 - core index']
  #allocation1 [shape = 'u32[72,128]{1,0:T(1,128)}', space=vmem, size = 0x9000, scoped, tag = 'internal scratch']
  %s0 = inlined_call_operand.vmem [shape: s32[256,1], index: 0, kind: input, shape index: {}]
  %s1 = inlined_call_operand.vmem [shape: s32[256,1], index: 1, kind: input, shape index: {}]
  %s2 = inlined_call_operand.vmem [shape: bf16[512,256], index: 2, kind: input, shape index: {}]
  %s3 = inlined_call_operand.hbm [shape: bf16[256,512], index: 3, kind: input, shape index: {}]
  %s4 = inlined_call_operand.hbm [shape: f32[1,512], index: 4, kind: input, shape index: {}]
  %s5 = inlined_call_operand.hbm [shape: f32[256,512], index: 5, kind: output, shape index: {0}]
  %s6 = inlined_call_operand.hbm [shape: f32[2,1,128], index: 6, kind: output, shape index: {1}]
  %7 = xla_tuple %s5, %s6
  %s8 = sld [smem:[#allocation0]]
  $region69: #{tpu_custom_call.1} parent=0
    _
  %s10 = ssub.s32 1, %s8
  %s11 = scalar_select 0, %s10, %s8
  $region1: #{tpu_custom_call.1} parent=0
    #allocation2 [shape = 'u8[262144]{0}', space=vmem, size = 0x40000, scoped, tag = 'input window, operand 3, single buffered']
    #allocation3 [shape = 's32[2]{0}', space=sflag, size = 0x8, scoped, tag = 'scoped memory for tpu_custom_call.1']
    #allocation4 [shape = 's32[2]{0}', space=sflag, size = 0x8, scoped, tag = 'scoped memory for tpu_custom_call.1']
    #allocation5 [shape = 'u8[2048]{0}', space=vmem, size = 0x800, scoped, tag = 'input window, operand 4, single buffered']
    #allocation6 [shape = 's32[1]{0}', space=sflag, size = 0x4, scoped, tag = 'scoped memory for tpu_custom_call.1']
    #allocation7 [shape = 'u8[524288]{0}', space=vmem, size = 0x80000, scoped, tag = 'output window, operand 0']
    #allocation8 [shape = 'u8[1024]{0}', space=vmem, size = 0x400, scoped, tag = 'output window, operand 1']
    #allocation9 [shape = 's32[2]{0}', space=sflag, size = 0x8, scoped, tag = 'scoped memory for tpu_custom_call.1']
    %12 = vsyncpa [#allocation3], 0
    %13 = vsyncpa [#allocation6], 0
    %14 = vsyncpa [#allocation4], 0
    %s15 = scalar_lea.sflag [#allocation4], 1
    %16 = vsyncpa %s15, 0
    %17 = vsyncpa [#allocation9], 0
    %s18 = scalar_lea.sflag [#allocation9], 1
    %19 = vsyncpa %s18, 0
    loop: start=0, step=1, limit=4
    $region2: #{tpu_custom_call.1} parent=1 // loop_pre_header
      _
    $region3: #{tpu_custom_call.1} parent=1 // loop_header
      %s21 = sphi 0, %s25
      %p22 = scmp.ge.s32.totalorder %s21, 4
      %s31 = sphi 0, %s33
      %s34 = sphi 0, %s31
      %s35 = sphi 0, %s34
      %s51 = sphi 0, %s35
      %s57 = sphi 0, %s59
      %s60 = sphi 0, %s57
      %s61 = sphi 0, %s60
      %s77 = sphi 0, %s61
      %s81 = sphi 0, %s81
      %s83 = sphi 0, %s81
      %s84 = sphi 0, %s83
      %s98 = sphi 0, %s84
      %s102 = sphi 0, %s102
      %s104 = sphi 0, %s102
      %s105 = sphi 0, %s104
      %s119 = sphi 0, %s105
      %s123 = sphi 0, %s123
      %s125 = sphi 0, %s123
      %s126 = sphi 0, %s125
      %s140 = sphi 0, %s126
      %s146 = sphi 0, %s148
      %s149 = sphi 0, %s146
      %s150 = sphi 0, %s149
      %s166 = sphi 0, %s150
      %s172 = sphi 0, %s174
      %s175 = sphi 0, %s172
      %s176 = sphi 0, %s175
      %s192 = sphi 0, %s176
    $region4: #{tpu_custom_call.1} parent=1 // loop_header_branch
      %24 = sbr.rel (%p22) target = $region8
    $region5: #{tpu_custom_call.1} parent=1 // loop_body
      %s26 = ssub.s32 %s21, 1
      %s27 = ssub.s32 %s21, 2
      %s28 = sadd.s32 %s21, 1
      %s29 = ssub.s32 %s21, %s28
      %p30 = scmp.eq.s32.totalorder %s29, 0
      %s32 = sadd.s32 %s31, 1
      %s33 = scalar_select %p30, %s31, %s32
      %p36 = pneg %p30
      %p37 = scmp.eq.s32.totalorder %s21, 1
      %p38 = por %p36, %p37
      %p39 = scmp.ne.s32.totalorder %s31, %s34
      %p40 = scmp.eq.s32.totalorder %s21, 0
      %p41 = por %p39, %p40
      %p42 = scmp.ne.s32.totalorder %s31, %s34
      %p43 = scmp.eq.s32.totalorder %s26, 1
      %p44 = por %p42, %p43
      %p45 = scmp.ne.s32.totalorder %s34, %s35
      %p46 = scmp.eq.s32.totalorder %s26, 0
      %p47 = por %p45, %p46
      %p48 = scmp.ne.s32.totalorder %s34, %s35
      %p49 = scmp.eq.s32.totalorder %s27, 1
      %p50 = por %p48, %p49
      %p52 = scmp.ne.s32.totalorder %s35, %s51
      %p53 = scmp.eq.s32.totalorder %s27, 0
      %p54 = por %p52, %p53
      %s55 = ssub.s32 %s21, %s28
      %p56 = scmp.eq.s32.totalorder %s55, 0
      %s58 = sadd.s32 %s57, 1
      %s59 = scalar_select %p56, %s57, %s58
      %p62 = pneg %p56
      %p63 = scmp.eq.s32.totalorder %s21, 1
      %p64 = por %p62, %p63
      %p65 = scmp.ne.s32.totalorder %s57, %s60
      %p66 = scmp.eq.s32.totalorder %s21, 0
      %p67 = por %p65, %p66
      %p68 = scmp.ne.s32.totalorder %s57, %s60
      %p69 = scmp.eq.s32.totalorder %s26, 1
      %p70 = por %p68, %p69
      %p71 = scmp.ne.s32.totalorder %s60, %s61
      %p72 = scmp.eq.s32.totalorder %s26, 0
      %p73 = por %p71, %p72
      %p74 = scmp.ne.s32.totalorder %s60, %s61
      %p75 = scmp.eq.s32.totalorder %s27, 1
      %p76 = por %p74, %p75
      %p78 = scmp.ne.s32.totalorder %s61, %s77
      %p79 = scmp.eq.s32.totalorder %s27, 0
      %p80 = por %p78, %p79
      %s82 = sadd.s32 %s81, 1
      %p85 = scmp.eq.s32.totalorder %s21, 1
      %p86 = scmp.ne.s32.totalorder %s81, %s83
      %p87 = scmp.eq.s32.totalorder %s21, 0
      %p88 = por %p86, %p87
      %p89 = scmp.ne.s32.totalorder %s81, %s83
      %p90 = scmp.eq.s32.totalorder %s26, 1
      %p91 = por %p89, %p90
      %p92 = scmp.ne.s32.totalorder %s83, %s84
      %p93 = scmp.eq.s32.totalorder %s26, 0
      %p94 = por %p92, %p93
      %p95 = scmp.ne.s32.totalorder %s83, %s84
      %p96 = scmp.eq.s32.totalorder %s27, 1
      %p97 = por %p95, %p96
      %p99 = scmp.ne.s32.totalorder %s84, %s98
      %p100 = scmp.eq.s32.totalorder %s27, 0
      %p101 = por %p99, %p100
      %s103 = sadd.s32 %s102, 1
      %p106 = scmp.eq.s32.totalorder %s21, 1
      %p107 = scmp.ne.s32.totalorder %s102, %s104
      %p108 = scmp.eq.s32.totalorder %s21, 0
      %p109 = por %p107, %p108
      %p110 = scmp.ne.s32.totalorder %s102, %s104
      %p111 = scmp.eq.s32.totalorder %s26, 1
      %p112 = por %p110, %p111
      %p113 = scmp.ne.s32.totalorder %s104, %s105
      %p114 = scmp.eq.s32.totalorder %s26, 0
      %p115 = por %p113, %p114
      %p116 = scmp.ne.s32.totalorder %s104, %s105
      %p117 = scmp.eq.s32.totalorder %s27, 1
      %p118 = por %p116, %p117
      %p120 = scmp.ne.s32.totalorder %s105, %s119
      %p121 = scmp.eq.s32.totalorder %s27, 0
      %p122 = por %p120, %p121
      %s124 = sadd.s32 %s123, 1
      %p127 = scmp.eq.s32.totalorder %s21, 1
      %p128 = scmp.ne.s32.totalorder %s123, %s125
      %p129 = scmp.eq.s32.totalorder %s21, 0
      %p130 = por %p128, %p129
      %p131 = scmp.ne.s32.totalorder %s123, %s125
      %p132 = scmp.eq.s32.totalorder %s26, 1
      %p133 = por %p131, %p132
      %p134 = scmp.ne.s32.totalorder %s125, %s126
      %p135 = scmp.eq.s32.totalorder %s26, 0
      %p136 = por %p134, %p135
      %p137 = scmp.ne.s32.totalorder %s125, %s126
      %p138 = scmp.eq.s32.totalorder %s27, 1
      %p139 = por %p137, %p138
      %p141 = scmp.ne.s32.totalorder %s126, %s140
      %p142 = scmp.eq.s32.totalorder %s27, 0
      %p143 = por %p141, %p142
      %s144 = ssub.s32 %s21, %s28
      %p145 = scmp.eq.s32.totalorder %s144, 0
      %s147 = sadd.s32 %s146, 1
      %s148 = scalar_select %p145, %s146, %s147
      %p151 = pneg %p145
      %p152 = scmp.eq.s32.totalorder %s21, 1
      %p153 = por %p151, %p152
      %p154 = scmp.ne.s32.totalorder %s146, %s149
      %p155 = scmp.eq.s32.totalorder %s21, 0
      %p156 = por %p154, %p155
      %p157 = scmp.ne.s32.totalorder %s146, %s149
      %p158 = scmp.eq.s32.totalorder %s26, 1
      %p159 = por %p157, %p158
      %p160 = scmp.ne.s32.totalorder %s149, %s150
      %p161 = scmp.eq.s32.totalorder %s26, 0
      %p162 = por %p160, %p161
      %p163 = scmp.ne.s32.totalorder %s149, %s150
      %p164 = scmp.eq.s32.totalorder %s27, 1
      %p165 = por %p163, %p164
      %p167 = scmp.ne.s32.totalorder %s150, %s166
      %p168 = scmp.eq.s32.totalorder %s27, 0
      %p169 = por %p167, %p168
      %s170 = ssub.s32 %s21, %s28
      %p171 = scmp.eq.s32.totalorder %s170, 0
      %s173 = sadd.s32 %s172, 1
      %s174 = scalar_select %p171, %s172, %s173
      %p177 = pneg %p171
      %p178 = scmp.eq.s32.totalorder %s21, 1
      %p179 = por %p177, %p178
      %p180 = scmp.ne.s32.totalorder %s172, %s175
      %p181 = scmp.eq.s32.totalorder %s21, 0
      %p182 = por %p180, %p181
      %p183 = scmp.ne.s32.totalorder %s172, %s175
      %p184 = scmp.eq.s32.totalorder %s26, 1
      %p185 = por %p183, %p184
      %p186 = scmp.ne.s32.totalorder %s175, %s176
      %p187 = scmp.eq.s32.totalorder %s26, 0
      %p188 = por %p186, %p187
      %p189 = scmp.ne.s32.totalorder %s175, %s176
      %p190 = scmp.eq.s32.totalorder %s27, 1
      %p191 = por %p189, %p190
      %p193 = scmp.ne.s32.totalorder %s176, %s192
      %p194 = scmp.eq.s32.totalorder %s27, 0
      %p195 = por %p193, %p194
      %p196 = scmp.le.s32.totalorder 1, %s21
      %p197 = scmp.lt.s32.totalorder %s21, 3
      %p198 = pnand %p196, %p197
      %p199 = pneg %p198
      // Predicated region
      $region9: #{tpu_custom_call.1} parent=5 // pred_check
        _
      $region10: #{tpu_custom_call.1} parent=5 // pred_check_branch
        %201 = sbr.rel (%p198) target = $region12
      $region11: #{tpu_custom_call.1} parent=5 // pred_region
        %s202 = ssub.s32 %s21, 1
        // Predicated region
        $region13: #{tpu_custom_call.1} parent=11 // pred_check
          %p203 = pneg %p94
        $region14: #{tpu_custom_call.1} parent=11 // pred_check_branch
          %205 = sbr.rel (%p203) target = $region16
        $region15: #{tpu_custom_call.1} parent=11 // pred_region
          _
        $region16: #{tpu_custom_call.1} parent=11 // pred_fallthru
          _
        // Predicated region
        $region17: #{tpu_custom_call.1} parent=11 // pred_check
          %p206 = pneg %p115
        $region18: #{tpu_custom_call.1} parent=11 // pred_check_branch
          %208 = sbr.rel (%p206) target = $region20
        $region19: #{tpu_custom_call.1} parent=11 // pred_region
          %210 = vsyncadd [#allocation3], 0
          %s211 = sshll.u32 %s3, 4
          %s212 = int_to_ptr.hbm [resolvable:$true] %s211
          %s213 = sshll.u32 [#allocation2], 4
          %s214 = int_to_ptr.vmem [resolvable:$true] %s213
          %219 = dma.hbm_to_vmem [thread:$0]  %s212, 8192, %s214, [#allocation3], 256, 256, 16
        $region20: #{tpu_custom_call.1} parent=11 // pred_fallthru
          _
        // Predicated region
        $region21: #{tpu_custom_call.1} parent=11 // pred_check
          %p220 = pneg %p136
        $region22: #{tpu_custom_call.1} parent=11 // pred_check_branch
          %222 = sbr.rel (%p220) target = $region24
        $region23: #{tpu_custom_call.1} parent=11 // pred_region
          %224 = vsyncadd [#allocation6], 0
          %s226 = sshll.u32 %s4, 4
          %s227 = int_to_ptr.hbm [resolvable:$true] %s226
          %s228 = sshll.u32 [#allocation5], 4
          %s229 = int_to_ptr.vmem [resolvable:$true] %s228
          %231 = dma.hbm_to_vmem [thread:$0]  %s227, 64, %s229, [#allocation6]
        $region24: #{tpu_custom_call.1} parent=11 // pred_fallthru
          _
      $region12: #{tpu_custom_call.1} parent=5 // pred_fallthru
        _
      %p232 = scmp.lt.s32.totalorder %s21, 2
      // Predicated region
      $region25: #{tpu_custom_call.1} parent=5 // pred_check
        %p233 = pneg %p232
      $region26: #{tpu_custom_call.1} parent=5 // pred_check_branch
        %235 = sbr.rel (%p233) target = $region28
      $region27: #{tpu_custom_call.1} parent=5 // pred_region
        // Predicated region
        $region29: #{tpu_custom_call.1} parent=27 // pred_check
          %p236 = pneg %p41
        $region30: #{tpu_custom_call.1} parent=27 // pred_check_branch
          %238 = sbr.rel (%p236) target = $region32
        $region31: #{tpu_custom_call.1} parent=27 // pred_region
          %s239 = smul.u32 16, %s21
          %p240 = scmp.lt.s32.totalorder %s239, 31
          %s241 = scalar_select %p240, %s239, 31
          %s242 = smul.addr %s241, 8
          %s243 = scalar_lea.vmem %s0, %s242
          %s244 = smul.u32 16, %s21
        $region32: #{tpu_custom_call.1} parent=27 // pred_fallthru
          _
        // Predicated region
        $region33: #{tpu_custom_call.1} parent=27 // pred_check
          %p245 = pneg %p67
        $region34: #{tpu_custom_call.1} parent=27 // pred_check_branch
          %247 = sbr.rel (%p245) target = $region36
        $region35: #{tpu_custom_call.1} parent=27 // pred_region
          %s248 = smul.u32 16, %s21
          %p249 = scmp.lt.s32.totalorder %s248, 31
          %s250 = scalar_select %p249, %s248, 31
          %s251 = smul.addr %s250, 8
          %s252 = scalar_lea.vmem %s1, %s251
          %s253 = smul.u32 16, %s21
        $region36: #{tpu_custom_call.1} parent=27 // pred_fallthru
          _
      $region28: #{tpu_custom_call.1} parent=5 // pred_fallthru
        _
      %p254 = scmp.le.s32.totalorder 1, %s21
      %p255 = scmp.lt.s32.totalorder %s21, 3
      %p256 = pnand %p254, %p255
      %p257 = pneg %p256
      // Predicated region
      $region37: #{tpu_custom_call.1} parent=5 // pred_check
        _
      $region38: #{tpu_custom_call.1} parent=5 // pred_check_branch
        %259 = sbr.rel (%p256) target = $region40
      $region39: #{tpu_custom_call.1} parent=5 // pred_region
        %s260 = ssub.s32 %s21, 1
        // Predicated region
        $region41: #{tpu_custom_call.1} parent=39 // pred_check
          %p261 = pneg %p115
        $region42: #{tpu_custom_call.1} parent=39 // pred_check_branch
          %263 = sbr.rel (%p261) target = $region44
        $region43: #{tpu_custom_call.1} parent=39 // pred_region
          %265 = dma.done [#allocation3], 8192
        $region44: #{tpu_custom_call.1} parent=39 // pred_fallthru
          _
        // Predicated region
        $region45: #{tpu_custom_call.1} parent=39 // pred_check
          %p266 = pneg %p136
        $region46: #{tpu_custom_call.1} parent=39 // pred_check_branch
          %268 = sbr.rel (%p266) target = $region48
        $region47: #{tpu_custom_call.1} parent=39 // pred_region
          %270 = dma.done [#allocation6], 64
        $region48: #{tpu_custom_call.1} parent=39 // pred_fallthru
          _
        %s271 = smul.u32 16, %s26
        %p272 = scmp.lt.s32.totalorder %s271, 31
        %s273 = scalar_select %p272, %s271, 31
        %s274 = smul.addr %s273, 8
        %s275 = scalar_lea.vmem %s0, %s274
        %p276 = pneg %p47
        %p277 = pneg %p44
        %s278 = smul.u32 16, %s26
        %p279 = scmp.lt.s32.totalorder %s278, 31
        %s280 = scalar_select %p279, %s278, 31
        %s281 = smul.addr %s280, 8
        %s282 = scalar_lea.vmem %s1, %s281
        %p283 = pneg %p73
        %p284 = pneg %p70
        %p285 = pneg %p94
        %p286 = pneg %p91
        %p287 = pneg %p115
        %p288 = pneg %p112
        %p289 = pneg %p136
        %p290 = pneg %p133
        %p291 = pneg %p162
        %p292 = pneg %p159
        %s293 = sand.u32 %s149, 1
        %s294 = scalar_lea.sflag [#allocation4], %s293
        %s295 = sand.u32 %s149, 1
        %s296 = smul.addr %s295, 512
        %s297 = scalar_lea.vmem [#allocation7], %s296
        %p298 = pneg %p188
        %p299 = pneg %p185
        %s300 = sand.u32 %s175, 1
        %s301 = scalar_lea.sflag [#allocation9], %s300
        %s302 = sand.u32 %s175, 1
        %s303 = scalar_lea.vmem [#allocation8], %s302
        %s304 = smul.u32 16, %s26
        %p305 = scmp.lt.s32.totalorder %s304, 31
        %s306 = scalar_select %p305, %s304, 31
        %s307 = smul.addr %s306, 8
        %s308 = scalar_lea.vmem %s0, %s307
        %s309 = smul.u32 16, %s26
        %s310 = smul.u32 16, %s26
        %p311 = scmp.lt.s32.totalorder %s310, 31
        %s312 = scalar_select %p311, %s310, 31
        %s313 = smul.addr %s312, 8
        %s314 = scalar_lea.vmem %s1, %s313
        %s315 = smul.u32 16, %s26
        %s316 = smul.u32 16, %s26
        %v317 = vld [vmem:[%s308] sm:$0xff]
        %v318 = vld [vmem:[%s308 + $0x8] sm:$0xff]
        %v319 = vld [vmem:[%s308 + $0x10] sm:$0xff]
        %v320 = vld [vmem:[%s308 + $0x18] sm:$0xff]
        %v321 = vld [vmem:[%s308 + $0x20] sm:$0xff]
        %v322 = vld [vmem:[%s308 + $0x28] sm:$0xff]
        %v323 = vld [vmem:[%s308 + $0x30] sm:$0xff]
        %v324 = vld [vmem:[%s308 + $0x38] sm:$0xff]
        %v325 = vld [vmem:[%s308 + $0x40] sm:$0xff]
        %v326 = vld [vmem:[%s308 + $0x48] sm:$0xff]
        %v327 = vld [vmem:[%s308 + $0x50] sm:$0xff]
        %v328 = vld [vmem:[%s308 + $0x58] sm:$0xff]
        %v329 = vld [vmem:[%s308 + $0x60] sm:$0xff]
        %v330 = vld [vmem:[%s308 + $0x68] sm:$0xff]
        %v331 = vld [vmem:[%s308 + $0x70] sm:$0xff]
        %v332 = vld [vmem:[%s308 + $0x78] sm:$0xff]
        %v333 = vld [vmem:[%s314] sm:$0xff]
        %v334 = vld [vmem:[%s314 + $0x8] sm:$0xff]
        %v335 = vld [vmem:[%s314 + $0x10] sm:$0xff]
        %v336 = vld [vmem:[%s314 + $0x18] sm:$0xff]
        %v337 = vld [vmem:[%s314 + $0x20] sm:$0xff]
        %v338 = vld [vmem:[%s314 + $0x28] sm:$0xff]
        %v339 = vld [vmem:[%s314 + $0x30] sm:$0xff]
        %v340 = vld [vmem:[%s314 + $0x38] sm:$0xff]
        %v341 = vld [vmem:[%s314 + $0x40] sm:$0xff]
        %v342 = vld [vmem:[%s314 + $0x48] sm:$0xff]
        %v343 = vld [vmem:[%s314 + $0x50] sm:$0xff]
        %v344 = vld [vmem:[%s314 + $0x58] sm:$0xff]
        %v345 = vld [vmem:[%s314 + $0x60] sm:$0xff]
        %v346 = vld [vmem:[%s314 + $0x68] sm:$0xff]
        %v347 = vld [vmem:[%s314 + $0x70] sm:$0xff]
        %v348 = vld [vmem:[%s314 + $0x78] sm:$0xff]
        %v349 = vlaneseq
        %v350 = vand.u32 %v349, 127
        %v351 = vadd.s32 %v350, 128
        %v352 = vadd.s32 %v350, 256
        %v353 = vadd.s32 %v350, 384
        %354 = vset.pattern.permute.xlu0 0
        %355 = vperm.xlu0 %354, %v317
        %v356 = vpop.permute.xlu0 %355
        %357 = vset.pattern.permute.xlu0 0
        %358 = vperm.xlu0 %357, %v318
        %v359 = vpop.permute.xlu0 %358
        %360 = vset.pattern.permute.xlu0 0
        %361 = vperm.xlu0 %360, %v319
        %v362 = vpop.permute.xlu0 %361
        %363 = vset.pattern.permute.xlu0 0
        %364 = vperm.xlu0 %363, %v320
        %v365 = vpop.permute.xlu0 %364
        %366 = vset.pattern.permute.xlu0 0
        %367 = vperm.xlu0 %366, %v321
        %v368 = vpop.permute.xlu0 %367
        %369 = vset.pattern.permute.xlu0 0
        %370 = vperm.xlu0 %369, %v322
        %v371 = vpop.permute.xlu0 %370
        %372 = vset.pattern.permute.xlu0 0
        %373 = vperm.xlu0 %372, %v323
        %v374 = vpop.permute.xlu0 %373
        %375 = vset.pattern.permute.xlu0 0
        %376 = vperm.xlu0 %375, %v324
        %v377 = vpop.permute.xlu0 %376
        %378 = vset.pattern.permute.xlu0 0
        %379 = vperm.xlu0 %378, %v325
        %v380 = vpop.permute.xlu0 %379
        %381 = vset.pattern.permute.xlu0 0
        %382 = vperm.xlu0 %381, %v326
        %v383 = vpop.permute.xlu0 %382
        %384 = vset.pattern.permute.xlu0 0
        %385 = vperm.xlu0 %384, %v327
        %v386 = vpop.permute.xlu0 %385
        %387 = vset.pattern.permute.xlu0 0
        %388 = vperm.xlu0 %387, %v328
        %v389 = vpop.permute.xlu0 %388
        %390 = vset.pattern.permute.xlu0 0
        %391 = vperm.xlu0 %390, %v329
        %v392 = vpop.permute.xlu0 %391
        %393 = vset.pattern.permute.xlu0 0
        %394 = vperm.xlu0 %393, %v330
        %v395 = vpop.permute.xlu0 %394
        %396 = vset.pattern.permute.xlu0 0
        %397 = vperm.xlu0 %396, %v331
        %v398 = vpop.permute.xlu0 %397
        %399 = vset.pattern.permute.xlu0 0
        %400 = vperm.xlu0 %399, %v332
        %v401 = vpop.permute.xlu0 %400
        %vm402 = vcmp.eq.s32.totalorder %v350, %v356
        %vm403 = vcmp.eq.s32.totalorder %v351, %v356
        %vm404 = vcmp.eq.s32.totalorder %v352, %v356
        %vm405 = vcmp.eq.s32.totalorder %v353, %v356
        %vm406 = vcmp.eq.s32.totalorder %v350, %v359
        %vm407 = vcmp.eq.s32.totalorder %v351, %v359
        %vm408 = vcmp.eq.s32.totalorder %v352, %v359
        %vm409 = vcmp.eq.s32.totalorder %v353, %v359
        %vm410 = vcmp.eq.s32.totalorder %v350, %v362
        %vm411 = vcmp.eq.s32.totalorder %v351, %v362
        %vm412 = vcmp.eq.s32.totalorder %v352, %v362
        %vm413 = vcmp.eq.s32.totalorder %v353, %v362
        %vm414 = vcmp.eq.s32.totalorder %v350, %v365
        %vm415 = vcmp.eq.s32.totalorder %v351, %v365
        %vm416 = vcmp.eq.s32.totalorder %v352, %v365
        %vm417 = vcmp.eq.s32.totalorder %v353, %v365
        %vm418 = vcmp.eq.s32.totalorder %v350, %v368
        %vm419 = vcmp.eq.s32.totalorder %v351, %v368
        %vm420 = vcmp.eq.s32.totalorder %v352, %v368
        %vm421 = vcmp.eq.s32.totalorder %v353, %v368
        %vm422 = vcmp.eq.s32.totalorder %v350, %v371
        %vm423 = vcmp.eq.s32.totalorder %v351, %v371
        %vm424 = vcmp.eq.s32.totalorder %v352, %v371
        %vm425 = vcmp.eq.s32.totalorder %v353, %v371
        %vm426 = vcmp.eq.s32.totalorder %v350, %v374
        %vm427 = vcmp.eq.s32.totalorder %v351, %v374
        %vm428 = vcmp.eq.s32.totalorder %v352, %v374
        %vm429 = vcmp.eq.s32.totalorder %v353, %v374
        %vm430 = vcmp.eq.s32.totalorder %v350, %v377
        %vm431 = vcmp.eq.s32.totalorder %v351, %v377
        %vm432 = vcmp.eq.s32.totalorder %v352, %v377
        %vm433 = vcmp.eq.s32.totalorder %v353, %v377
        %vm434 = vcmp.eq.s32.totalorder %v350, %v380
        %vm435 = vcmp.eq.s32.totalorder %v351, %v380
        %vm436 = vcmp.eq.s32.totalorder %v352, %v380
        %vm437 = vcmp.eq.s32.totalorder %v353, %v380
        %vm438 = vcmp.eq.s32.totalorder %v350, %v383
        %vm439 = vcmp.eq.s32.totalorder %v351, %v383
        %vm440 = vcmp.eq.s32.totalorder %v352, %v383
        %vm441 = vcmp.eq.s32.totalorder %v353, %v383
        %vm442 = vcmp.eq.s32.totalorder %v350, %v386
        %vm443 = vcmp.eq.s32.totalorder %v351, %v386
        %vm444 = vcmp.eq.s32.totalorder %v352, %v386
        %vm445 = vcmp.eq.s32.totalorder %v353, %v386
        %vm446 = vcmp.eq.s32.totalorder %v350, %v389
        %vm447 = vcmp.eq.s32.totalorder %v351, %v389
        %vm448 = vcmp.eq.s32.totalorder %v352, %v389
        %vm449 = vcmp.eq.s32.totalorder %v353, %v389
        %vm450 = vcmp.eq.s32.totalorder %v350, %v392
        %vm451 = vcmp.eq.s32.totalorder %v351, %v392
        %vm452 = vcmp.eq.s32.totalorder %v352, %v392
        %vm453 = vcmp.eq.s32.totalorder %v353, %v392
        %vm454 = vcmp.eq.s32.totalorder %v350, %v395
        %vm455 = vcmp.eq.s32.totalorder %v351, %v395
        %vm456 = vcmp.eq.s32.totalorder %v352, %v395
        %vm457 = vcmp.eq.s32.totalorder %v353, %v395
        %vm458 = vcmp.eq.s32.totalorder %v350, %v398
        %vm459 = vcmp.eq.s32.totalorder %v351, %v398
        %vm460 = vcmp.eq.s32.totalorder %v352, %v398
        %vm461 = vcmp.eq.s32.totalorder %v353, %v398
        %vm462 = vcmp.eq.s32.totalorder %v350, %v401
        %vm463 = vcmp.eq.s32.totalorder %v351, %v401
        %vm464 = vcmp.eq.s32.totalorder %v352, %v401
        %vm465 = vcmp.eq.s32.totalorder %v353, %v401
        %v466 = vsel %vm402, 1, 0
        %v467 = vsel %vm403, 1, 0
        %v468 = vsel %vm404, 1, 0
        %v469 = vsel %vm405, 1, 0
        %v470 = vsel %vm406, 1, 0
        %v471 = vsel %vm407, 1, 0
        %v472 = vsel %vm408, 1, 0
        %v473 = vsel %vm409, 1, 0
        %v474 = vsel %vm410, 1, 0
        %v475 = vsel %vm411, 1, 0
        %v476 = vsel %vm412, 1, 0
        %v477 = vsel %vm413, 1, 0
        %v478 = vsel %vm414, 1, 0
        %v479 = vsel %vm415, 1, 0
        %v480 = vsel %vm416, 1, 0
        %v481 = vsel %vm417, 1, 0
        %v482 = vsel %vm418, 1, 0
        %v483 = vsel %vm419, 1, 0
        %v484 = vsel %vm420, 1, 0
        %v485 = vsel %vm421, 1, 0
        %v486 = vsel %vm422, 1, 0
        %v487 = vsel %vm423, 1, 0
        %v488 = vsel %vm424, 1, 0
        %v489 = vsel %vm425, 1, 0
        %v490 = vsel %vm426, 1, 0
        %v491 = vsel %vm427, 1, 0
        %v492 = vsel %vm428, 1, 0
        %v493 = vsel %vm429, 1, 0
        %v494 = vsel %vm430, 1, 0
        %v495 = vsel %vm431, 1, 0
        %v496 = vsel %vm432, 1, 0
        %v497 = vsel %vm433, 1, 0
        %v498 = vsel %vm434, 1, 0
        %v499 = vsel %vm435, 1, 0
        %v500 = vsel %vm436, 1, 0
        %v501 = vsel %vm437, 1, 0
        %v502 = vsel %vm438, 1, 0
        %v503 = vsel %vm439, 1, 0
        %v504 = vsel %vm440, 1, 0
        %v505 = vsel %vm441, 1, 0
        %v506 = vsel %vm442, 1, 0
        %v507 = vsel %vm443, 1, 0
        %v508 = vsel %vm444, 1, 0
        %v509 = vsel %vm445, 1, 0
        %v510 = vsel %vm446, 1, 0
        %v511 = vsel %vm447, 1, 0
        %v512 = vsel %vm448, 1, 0
        %v513 = vsel %vm449, 1, 0
        %v514 = vsel %vm450, 1, 0
        %v515 = vsel %vm451, 1, 0
        %v516 = vsel %vm452, 1, 0
        %v517 = vsel %vm453, 1, 0
        %v518 = vsel %vm454, 1, 0
        %v519 = vsel %vm455, 1, 0
        %v520 = vsel %vm456, 1, 0
        %v521 = vsel %vm457, 1, 0
        %v522 = vsel %vm458, 1, 0
        %v523 = vsel %vm459, 1, 0
        %v524 = vsel %vm460, 1, 0
        %v525 = vsel %vm461, 1, 0
        %v526 = vsel %vm462, 1, 0
        %v527 = vsel %vm463, 1, 0
        %v528 = vsel %vm464, 1, 0
        %v529 = vsel %vm465, 1, 0
        %v530 = vcvt.s32.f32 %v466
        %v531 = vcvt.s32.f32 %v467
        %v532 = vcvt.s32.f32 %v468
        %v533 = vcvt.s32.f32 %v469
        %v534 = vcvt.s32.f32 %v470
        %v535 = vcvt.s32.f32 %v471
        %v536 = vcvt.s32.f32 %v472
        %v537 = vcvt.s32.f32 %v473
        %v538 = vcvt.s32.f32 %v474
        %v539 = vcvt.s32.f32 %v475
        %v540 = vcvt.s32.f32 %v476
        %v541 = vcvt.s32.f32 %v477
        %v542 = vcvt.s32.f32 %v478
        %v543 = vcvt.s32.f32 %v479
        %v544 = vcvt.s32.f32 %v480
        %v545 = vcvt.s32.f32 %v481
        %v546 = vcvt.s32.f32 %v482
        %v547 = vcvt.s32.f32 %v483
        %v548 = vcvt.s32.f32 %v484
        %v549 = vcvt.s32.f32 %v485
        %v550 = vcvt.s32.f32 %v486
        %v551 = vcvt.s32.f32 %v487
        %v552 = vcvt.s32.f32 %v488
        %v553 = vcvt.s32.f32 %v489
        %v554 = vcvt.s32.f32 %v490
        %v555 = vcvt.s32.f32 %v491
        %v556 = vcvt.s32.f32 %v492
        %v557 = vcvt.s32.f32 %v493
        %v558 = vcvt.s32.f32 %v494
        %v559 = vcvt.s32.f32 %v495
        %v560 = vcvt.s32.f32 %v496
        %v561 = vcvt.s32.f32 %v497
        %v562 = vcvt.s32.f32 %v498
        %v563 = vcvt.s32.f32 %v499
        %v564 = vcvt.s32.f32 %v500
        %v565 = vcvt.s32.f32 %v501
        %v566 = vcvt.s32.f32 %v502
        %v567 = vcvt.s32.f32 %v503
        %v568 = vcvt.s32.f32 %v504
        %v569 = vcvt.s32.f32 %v505
        %v570 = vcvt.s32.f32 %v506
        %v571 = vcvt.s32.f32 %v507
        %v572 = vcvt.s32.f32 %v508
        %v573 = vcvt.s32.f32 %v509
        %v574 = vcvt.s32.f32 %v510
        %v575 = vcvt.s32.f32 %v511
        %v576 = vcvt.s32.f32 %v512
        %v577 = vcvt.s32.f32 %v513
        %v578 = vcvt.s32.f32 %v514
        %v579 = vcvt.s32.f32 %v515
        %v580 = vcvt.s32.f32 %v516
        %v581 = vcvt.s32.f32 %v517
        %v582 = vcvt.s32.f32 %v518
        %v583 = vcvt.s32.f32 %v519
        %v584 = vcvt.s32.f32 %v520
        %v585 = vcvt.s32.f32 %v521
        %v586 = vcvt.s32.f32 %v522
        %v587 = vcvt.s32.f32 %v523
        %v588 = vcvt.s32.f32 %v524
        %v589 = vcvt.s32.f32 %v525
        %v590 = vcvt.s32.f32 %v526
        %v591 = vcvt.s32.f32 %v527
        %v592 = vcvt.s32.f32 %v528
        %v593 = vcvt.s32.f32 %v529
        %v594 = vpack.c.bf16 %v534, %v530
        %v595 = vpack.c.bf16 %v535, %v531
        %v596 = vpack.c.bf16 %v536, %v532
        %v597 = vpack.c.bf16 %v537, %v533
        %v598 = vpack.c.bf16 %v542, %v538
        %v599 = vpack.c.bf16 %v543, %v539
        %v600 = vpack.c.bf16 %v544, %v540
        %v601 = vpack.c.bf16 %v545, %v541
        %v602 = vpack.c.bf16 %v550, %v546
        %v603 = vpack.c.bf16 %v551, %v547
        %v604 = vpack.c.bf16 %v552, %v548
        %v605 = vpack.c.bf16 %v553, %v549
        %v606 = vpack.c.bf16 %v558, %v554
        %v607 = vpack.c.bf16 %v559, %v555
        %v608 = vpack.c.bf16 %v560, %v556
        %v609 = vpack.c.bf16 %v561, %v557
        %v610 = vpack.c.bf16 %v566, %v562
        %v611 = vpack.c.bf16 %v567, %v563
        %v612 = vpack.c.bf16 %v568, %v564
        %v613 = vpack.c.bf16 %v569, %v565
        %v614 = vpack.c.bf16 %v574, %v570
        %v615 = vpack.c.bf16 %v575, %v571
        %v616 = vpack.c.bf16 %v576, %v572
        %v617 = vpack.c.bf16 %v577, %v573
        %v618 = vpack.c.bf16 %v582, %v578
        %v619 = vpack.c.bf16 %v583, %v579
        %v620 = vpack.c.bf16 %v584, %v580
        %v621 = vpack.c.bf16 %v585, %v581
        %v622 = vpack.c.bf16 %v590, %v586
        %v623 = vpack.c.bf16 %v591, %v587
        %v624 = vpack.c.bf16 %v592, %v588
        %v625 = vpack.c.bf16 %v593, %v589
        %v626 = vld [vmem:[%s2] sm:$0xff]
        %v627 = vld [vmem:[%s2 + $0x8] sm:$0xff]
        %v628 = vld [vmem:[%s2 + $0x10] sm:$0xff]
        %v629 = vld [vmem:[%s2 + $0x18] sm:$0xff]
        %v630 = vld [vmem:[%s2 + $0x20] sm:$0xff]
        %v631 = vld [vmem:[%s2 + $0x28] sm:$0xff]
        %v632 = vld [vmem:[%s2 + $0x30] sm:$0xff]
        %v633 = vld [vmem:[%s2 + $0x38] sm:$0xff]
        %v634 = vld [vmem:[%s2 + $0x40] sm:$0xff]
        %v635 = vld [vmem:[%s2 + $0x48] sm:$0xff]
        %v636 = vld [vmem:[%s2 + $0x50] sm:$0xff]
        %v637 = vld [vmem:[%s2 + $0x58] sm:$0xff]
        %v638 = vld [vmem:[%s2 + $0x60] sm:$0xff]
        %v639 = vld [vmem:[%s2 + $0x68] sm:$0xff]
        %v640 = vld [vmem:[%s2 + $0x70] sm:$0xff]
        %v641 = vld [vmem:[%s2 + $0x78] sm:$0xff]
        %v642 = vld [vmem:[%s2 + $0x80] sm:$0xff]
        %v643 = vld [vmem:[%s2 + $0x88] sm:$0xff]
        %v644 = vld [vmem:[%s2 + $0x90] sm:$0xff]
        %v645 = vld [vmem:[%s2 + $0x98] sm:$0xff]
        %v646 = vld [vmem:[%s2 + $0xa0] sm:$0xff]
        %v647 = vld [vmem:[%s2 + $0xa8] sm:$0xff]
        %v648 = vld [vmem:[%s2 + $0xb0] sm:$0xff]
        %v649 = vld [vmem:[%s2 + $0xb8] sm:$0xff]
        %v650 = vld [vmem:[%s2 + $0xc0] sm:$0xff]
        %v651 = vld [vmem:[%s2 + $0xc8] sm:$0xff]
        %v652 = vld [vmem:[%s2 + $0xd0] sm:$0xff]
        %v653 = vld [vmem:[%s2 + $0xd8] sm:$0xff]
        %v654 = vld [vmem:[%s2 + $0xe0] sm:$0xff]
        %v655 = vld [vmem:[%s2 + $0xe8] sm:$0xff]
        %v656 = vld [vmem:[%s2 + $0xf0] sm:$0xff]
        %v657 = vld [vmem:[%s2 + $0xf8] sm:$0xff]
        %v658 = vld [vmem:[%s2 + $0x100] sm:$0xff]
        %v659 = vld [vmem:[%s2 + $0x108] sm:$0xff]
        %v660 = vld [vmem:[%s2 + $0x110] sm:$0xff]
        %v661 = vld [vmem:[%s2 + $0x118] sm:$0xff]
        %v662 = vld [vmem:[%s2 + $0x120] sm:$0xff]
        %v663 = vld [vmem:[%s2 + $0x128] sm:$0xff]
        %v664 = vld [vmem:[%s2 + $0x130] sm:$0xff]
        %v665 = vld [vmem:[%s2 + $0x138] sm:$0xff]
        %v666 = vld [vmem:[%s2 + $0x140] sm:$0xff]
        %v667 = vld [vmem:[%s2 + $0x148] sm:$0xff]
        %v668 = vld [vmem:[%s2 + $0x150] sm:$0xff]
        %v669 = vld [vmem:[%s2 + $0x158] sm:$0xff]
        %v670 = vld [vmem:[%s2 + $0x160] sm:$0xff]
        %v671 = vld [vmem:[%s2 + $0x168] sm:$0xff]
        %v672 = vld [vmem:[%s2 + $0x170] sm:$0xff]
        %v673 = vld [vmem:[%s2 + $0x178] sm:$0xff]
        %v674 = vld [vmem:[%s2 + $0x180] sm:$0xff]
        %v675 = vld [vmem:[%s2 + $0x188] sm:$0xff]
        %v676 = vld [vmem:[%s2 + $0x190] sm:$0xff]
        %v677 = vld [vmem:[%s2 + $0x198] sm:$0xff]
        %v678 = vld [vmem:[%s2 + $0x1a0] sm:$0xff]
        %v679 = vld [vmem:[%s2 + $0x1a8] sm:$0xff]
        %v680 = vld [vmem:[%s2 + $0x1b0] sm:$0xff]
        %v681 = vld [vmem:[%s2 + $0x1b8] sm:$0xff]
        %v682 = vld [vmem:[%s2 + $0x1c0] sm:$0xff]
        %v683 = vld [vmem:[%s2 + $0x1c8] sm:$0xff]
        %v684 = vld [vmem:[%s2 + $0x1d0] sm:$0xff]
        %v685 = vld [vmem:[%s2 + $0x1d8] sm:$0xff]
        %v686 = vld [vmem:[%s2 + $0x1e0] sm:$0xff]
        %v687 = vld [vmem:[%s2 + $0x1e8] sm:$0xff]
        %v688 = vld [vmem:[%s2 + $0x1f0] sm:$0xff]
        %v689 = vld [vmem:[%s2 + $0x1f8] sm:$0xff]
        %v754 = vunpack.c.l.b16 %v626
        %v755 = vunpack.c.h.b16 %v626
        %v756 = vunpack.c.l.b16 %v627
        %v757 = vunpack.c.h.b16 %v627
        %v758 = vunpack.c.l.b16 %v628
        %v759 = vunpack.c.h.b16 %v628
        %v760 = vunpack.c.l.b16 %v629
        %v761 = vunpack.c.h.b16 %v629
        %v762 = vunpack.c.l.b16 %v630
        %v763 = vunpack.c.h.b16 %v630
        %v764 = vunpack.c.l.b16 %v631
        %v765 = vunpack.c.h.b16 %v631
        %v766 = vunpack.c.l.b16 %v632
        %v767 = vunpack.c.h.b16 %v632
        %v768 = vunpack.c.l.b16 %v633
        %v769 = vunpack.c.h.b16 %v633
        %v770 = vunpack.c.l.b16 %v634
        %v771 = vunpack.c.h.b16 %v634
        %v772 = vunpack.c.l.b16 %v635
        %v773 = vunpack.c.h.b16 %v635
        %v774 = vunpack.c.l.b16 %v636
        %v775 = vunpack.c.h.b16 %v636
        %v776 = vunpack.c.l.b16 %v637
        %v777 = vunpack.c.h.b16 %v637
        %v778 = vunpack.c.l.b16 %v638
        %v779 = vunpack.c.h.b16 %v638
        %v780 = vunpack.c.l.b16 %v639
        %v781 = vunpack.c.h.b16 %v639
        %v782 = vunpack.c.l.b16 %v640
        %v783 = vunpack.c.h.b16 %v640
        %v784 = vunpack.c.l.b16 %v641
        %v785 = vunpack.c.h.b16 %v641
        %v786 = vunpack.c.l.b16 %v642
        %v787 = vunpack.c.h.b16 %v642
        %v788 = vunpack.c.l.b16 %v643
        %v789 = vunpack.c.h.b16 %v643
        %v790 = vunpack.c.l.b16 %v644
        %v791 = vunpack.c.h.b16 %v644
        %v792 = vunpack.c.l.b16 %v645
        %v793 = vunpack.c.h.b16 %v645
        %v794 = vunpack.c.l.b16 %v646
        %v795 = vunpack.c.h.b16 %v646
        %v796 = vunpack.c.l.b16 %v647
        %v797 = vunpack.c.h.b16 %v647
        %v798 = vunpack.c.l.b16 %v648
        %v799 = vunpack.c.h.b16 %v648
        %v800 = vunpack.c.l.b16 %v649
        %v801 = vunpack.c.h.b16 %v649
        %v802 = vunpack.c.l.b16 %v650
        %v803 = vunpack.c.h.b16 %v650
        %v804 = vunpack.c.l.b16 %v651
        %v805 = vunpack.c.h.b16 %v651
        %v806 = vunpack.c.l.b16 %v652
        %v807 = vunpack.c.h.b16 %v652
        %v808 = vunpack.c.l.b16 %v653
        %v809 = vunpack.c.h.b16 %v653
        %v810 = vunpack.c.l.b16 %v654
        %v811 = vunpack.c.h.b16 %v654
        %v812 = vunpack.c.l.b16 %v655
        %v813 = vunpack.c.h.b16 %v655
        %v814 = vunpack.c.l.b16 %v656
        %v815 = vunpack.c.h.b16 %v656
        %v816 = vunpack.c.l.b16 %v657
        %v817 = vunpack.c.h.b16 %v657
        %v818 = vunpack.c.l.b16 %v658
        %v819 = vunpack.c.h.b16 %v658
        %v820 = vunpack.c.l.b16 %v659
        %v821 = vunpack.c.h.b16 %v659
        %v822 = vunpack.c.l.b16 %v660
        %v823 = vunpack.c.h.b16 %v660
        %v824 = vunpack.c.l.b16 %v661
        %v825 = vunpack.c.h.b16 %v661
        %v826 = vunpack.c.l.b16 %v662
        %v827 = vunpack.c.h.b16 %v662
        %v828 = vunpack.c.l.b16 %v663
        %v829 = vunpack.c.h.b16 %v663
        %v830 = vunpack.c.l.b16 %v664
        %v831 = vunpack.c.h.b16 %v664
        %v832 = vunpack.c.l.b16 %v665
        %v833 = vunpack.c.h.b16 %v665
        %v834 = vunpack.c.l.b16 %v666
        %v835 = vunpack.c.h.b16 %v666
        %v836 = vunpack.c.l.b16 %v667
        %v837 = vunpack.c.h.b16 %v667
        %v838 = vunpack.c.l.b16 %v668
        %v839 = vunpack.c.h.b16 %v668
        %v840 = vunpack.c.l.b16 %v669
        %v841 = vunpack.c.h.b16 %v669
        %v842 = vunpack.c.l.b16 %v670
        %v843 = vunpack.c.h.b16 %v670
        %v844 = vunpack.c.l.b16 %v671
        %v845 = vunpack.c.h.b16 %v671
        %v846 = vunpack.c.l.b16 %v672
        %v847 = vunpack.c.h.b16 %v672
        %v848 = vunpack.c.l.b16 %v673
        %v849 = vunpack.c.h.b16 %v673
        %v850 = vunpack.c.l.b16 %v674
        %v851 = vunpack.c.h.b16 %v674
        %v852 = vunpack.c.l.b16 %v675
        %v853 = vunpack.c.h.b16 %v675
        %v854 = vunpack.c.l.b16 %v676
        %v855 = vunpack.c.h.b16 %v676
        %v856 = vunpack.c.l.b16 %v677
        %v857 = vunpack.c.h.b16 %v677
        %v858 = vunpack.c.l.b16 %v678
        %v859 = vunpack.c.h.b16 %v678
        %v860 = vunpack.c.l.b16 %v679
        %v861 = vunpack.c.h.b16 %v679
        %v862 = vunpack.c.l.b16 %v680
        %v863 = vunpack.c.h.b16 %v680
        %v864 = vunpack.c.l.b16 %v681
        %v865 = vunpack.c.h.b16 %v681
        %v866 = vunpack.c.l.b16 %v682
        %v867 = vunpack.c.h.b16 %v682
        %v868 = vunpack.c.l.b16 %v683
        %v869 = vunpack.c.h.b16 %v683
        %v870 = vunpack.c.l.b16 %v684
        %v871 = vunpack.c.h.b16 %v684
        %v872 = vunpack.c.l.b16 %v685
        %v873 = vunpack.c.h.b16 %v685
        %v874 = vunpack.c.l.b16 %v686
        %v875 = vunpack.c.h.b16 %v686
        %v876 = vunpack.c.l.b16 %v687
        %v877 = vunpack.c.h.b16 %v687
        %v878 = vunpack.c.l.b16 %v688
        %v879 = vunpack.c.h.b16 %v688
        %v880 = vunpack.c.l.b16 %v689
        %v881 = vunpack.c.h.b16 %v689
        %v882 = vpack.c.b16 %v756, %v754
        %v883 = vpack.c.b16 %v757, %v755
        %v884 = vpack.c.b16 %v760, %v758
        %v885 = vpack.c.b16 %v761, %v759
        %v886 = vpack.c.b16 %v764, %v762
        %v887 = vpack.c.b16 %v765, %v763
        %v888 = vpack.c.b16 %v768, %v766
        %v889 = vpack.c.b16 %v769, %v767
        %v890 = vpack.c.b16 %v772, %v770
        %v891 = vpack.c.b16 %v773, %v771
        %v892 = vpack.c.b16 %v776, %v774
        %v893 = vpack.c.b16 %v777, %v775
        %v894 = vpack.c.b16 %v780, %v778
        %v895 = vpack.c.b16 %v781, %v779
        %v896 = vpack.c.b16 %v784, %v782
        %v897 = vpack.c.b16 %v785, %v783
        %v898 = vpack.c.b16 %v788, %v786
        %v899 = vpack.c.b16 %v789, %v787
        %v900 = vpack.c.b16 %v792, %v790
        %v901 = vpack.c.b16 %v793, %v791
        %v902 = vpack.c.b16 %v796, %v794
        %v903 = vpack.c.b16 %v797, %v795
        %v904 = vpack.c.b16 %v800, %v798
        %v905 = vpack.c.b16 %v801, %v799
        %v906 = vpack.c.b16 %v804, %v802
        %v907 = vpack.c.b16 %v805, %v803
        %v908 = vpack.c.b16 %v808, %v806
        %v909 = vpack.c.b16 %v809, %v807
        %v910 = vpack.c.b16 %v812, %v810
        %v911 = vpack.c.b16 %v813, %v811
        %v912 = vpack.c.b16 %v816, %v814
        %v913 = vpack.c.b16 %v817, %v815
        %v914 = vpack.c.b16 %v820, %v818
        %v915 = vpack.c.b16 %v821, %v819
        %v916 = vpack.c.b16 %v824, %v822
        %v917 = vpack.c.b16 %v825, %v823
        %v918 = vpack.c.b16 %v828, %v826
        %v919 = vpack.c.b16 %v829, %v827
        %v920 = vpack.c.b16 %v832, %v830
        %v921 = vpack.c.b16 %v833, %v831
        %v922 = vpack.c.b16 %v836, %v834
        %v923 = vpack.c.b16 %v837, %v835
        %v924 = vpack.c.b16 %v840, %v838
        %v925 = vpack.c.b16 %v841, %v839
        %v926 = vpack.c.b16 %v844, %v842
        %v927 = vpack.c.b16 %v845, %v843
        %v928 = vpack.c.b16 %v848, %v846
        %v929 = vpack.c.b16 %v849, %v847
        %v930 = vpack.c.b16 %v852, %v850
        %v931 = vpack.c.b16 %v853, %v851
        %v932 = vpack.c.b16 %v856, %v854
        %v933 = vpack.c.b16 %v857, %v855
        %v934 = vpack.c.b16 %v860, %v858
        %v935 = vpack.c.b16 %v861, %v859
        %v936 = vpack.c.b16 %v864, %v862
        %v937 = vpack.c.b16 %v865, %v863
        %v938 = vpack.c.b16 %v868, %v866
        %v939 = vpack.c.b16 %v869, %v867
        %v940 = vpack.c.b16 %v872, %v870
        %v941 = vpack.c.b16 %v873, %v871
        %v942 = vpack.c.b16 %v876, %v874
        %v943 = vpack.c.b16 %v877, %v875
        %v944 = vpack.c.b16 %v880, %v878
        %v945 = vpack.c.b16 %v881, %v879
        %1010 = vmatpush.bf16.msra.mxu0 %v896
        %1011 = vmatpush.bf16.msra.mxu0 %v894
        %1012 = vmatpush.bf16.msra.mxu0 %v892
        %1013 = vmatpush.bf16.msra.mxu0 %v890
        %1014 = vmatpush.bf16.msra.mxu0 %v888
        %1015 = vmatpush.bf16.msra.mxu0 %v886
        %1016 = vmatpush.bf16.msra.mxu0 %v884
        %1017 = vmatpush.bf16.msra.mxu0 %v882
        %1018 = vmatmul.bf16.gmra.mxu0 %v594
        %v1019 = vpop.f32.mrf.mxu0
        %v1020 = vadd.f32 0.0, %v1019
        %v1021 = vpop.f32.mrf.mxu0
        %v1022 = vadd.f32 0.0, %v1021
        %1023 = vmatmul.bf16.gmra.mxu0 %v598
        %v1024 = vpop.f32.mrf.mxu0
        %v1025 = vadd.f32 0.0, %v1024
        %v1026 = vpop.f32.mrf.mxu0
        %v1027 = vadd.f32 0.0, %v1026
        %1028 = vmatmul.bf16.gmra.mxu0 %v602
        %v1029 = vpop.f32.mrf.mxu0
        %v1030 = vadd.f32 0.0, %v1029
        %v1031 = vpop.f32.mrf.mxu0
        %v1032 = vadd.f32 0.0, %v1031
        %1033 = vmatmul.bf16.gmra.mxu0 %v606
        %v1034 = vpop.f32.mrf.mxu0
        %v1035 = vadd.f32 0.0, %v1034
        %v1036 = vpop.f32.mrf.mxu0
        %v1037 = vadd.f32 0.0, %v1036
        %1038 = vmatmul.bf16.gmra.mxu0 %v610
        %v1039 = vpop.f32.mrf.mxu0
        %v1040 = vadd.f32 0.0, %v1039
        %v1041 = vpop.f32.mrf.mxu0
        %v1042 = vadd.f32 0.0, %v1041
        %1043 = vmatmul.bf16.gmra.mxu0 %v614
        %v1044 = vpop.f32.mrf.mxu0
        %v1045 = vadd.f32 0.0, %v1044
        %v1046 = vpop.f32.mrf.mxu0
        %v1047 = vadd.f32 0.0, %v1046
        %1048 = vmatmul.bf16.gmra.mxu0 %v618
        %v1049 = vpop.f32.mrf.mxu0
        %v1050 = vadd.f32 0.0, %v1049
        %v1051 = vpop.f32.mrf.mxu0
        %v1052 = vadd.f32 0.0, %v1051
        %1053 = vmatmul.bf16.gmra.mxu0 %v622
        %v1054 = vpop.f32.mrf.mxu0
        %v1055 = vadd.f32 0.0, %v1054
        %v1056 = vpop.f32.mrf.mxu0
        %v1057 = vadd.f32 0.0, %v1056
        %1058 = vdwg.mxu0
        %1059 = vmatpush.bf16.msra.mxu0 %v912
        %1060 = vmatpush.bf16.msra.mxu0 %v910
        %1061 = vmatpush.bf16.msra.mxu0 %v908
        %1062 = vmatpush.bf16.msra.mxu0 %v906
        %1063 = vmatpush.bf16.msra.mxu0 %v904
        %1064 = vmatpush.bf16.msra.mxu0 %v902
        %1065 = vmatpush.bf16.msra.mxu0 %v900
        %1066 = vmatpush.bf16.msra.mxu0 %v898
        %1067 = vmatmul.bf16.gmra.mxu0 %v595
        %v1068 = vpop.f32.mrf.mxu0
        %v1069 = vadd.f32 %v1020, %v1068
        %v1070 = vpop.f32.mrf.mxu0
        %v1071 = vadd.f32 %v1022, %v1070
        %1072 = vmatmul.bf16.gmra.mxu0 %v599
        %v1073 = vpop.f32.mrf.mxu0
        %v1074 = vadd.f32 %v1025, %v1073
        %v1075 = vpop.f32.mrf.mxu0
        %v1076 = vadd.f32 %v1027, %v1075
        %1077 = vmatmul.bf16.gmra.mxu0 %v603
        %v1078 = vpop.f32.mrf.mxu0
        %v1079 = vadd.f32 %v1030, %v1078
        %v1080 = vpop.f32.mrf.mxu0
        %v1081 = vadd.f32 %v1032, %v1080
        %1082 = vmatmul.bf16.gmra.mxu0 %v607
        %v1083 = vpop.f32.mrf.mxu0
        %v1084 = vadd.f32 %v1035, %v1083
        %v1085 = vpop.f32.mrf.mxu0
        %v1086 = vadd.f32 %v1037, %v1085
        %1087 = vmatmul.bf16.gmra.mxu0 %v611
        %v1088 = vpop.f32.mrf.mxu0
        %v1089 = vadd.f32 %v1040, %v1088
        %v1090 = vpop.f32.mrf.mxu0
        %v1091 = vadd.f32 %v1042, %v1090
        %1092 = vmatmul.bf16.gmra.mxu0 %v615
        %v1093 = vpop.f32.mrf.mxu0
        %v1094 = vadd.f32 %v1045, %v1093
        %v1095 = vpop.f32.mrf.mxu0
        %v1096 = vadd.f32 %v1047, %v1095
        %1097 = vmatmul.bf16.gmra.mxu0 %v619
        %v1098 = vpop.f32.mrf.mxu0
        %v1099 = vadd.f32 %v1050, %v1098
        %v1100 = vpop.f32.mrf.mxu0
        %v1101 = vadd.f32 %v1052, %v1100
        %1102 = vmatmul.bf16.gmra.mxu0 %v623
        %v1103 = vpop.f32.mrf.mxu0
        %v1104 = vadd.f32 %v1055, %v1103
        %v1105 = vpop.f32.mrf.mxu0
        %v1106 = vadd.f32 %v1057, %v1105
        %1107 = vdwg.mxu0
        %1108 = vmatpush.bf16.msra.mxu0 %v928
        %1109 = vmatpush.bf16.msra.mxu0 %v926
        %1110 = vmatpush.bf16.msra.mxu0 %v924
        %1111 = vmatpush.bf16.msra.mxu0 %v922
        %1112 = vmatpush.bf16.msra.mxu0 %v920
        %1113 = vmatpush.bf16.msra.mxu0 %v918
        %1114 = vmatpush.bf16.msra.mxu0 %v916
        %1115 = vmatpush.bf16.msra.mxu0 %v914
        %1116 = vmatmul.bf16.gmra.mxu0 %v596
        %v1117 = vpop.f32.mrf.mxu0
        %v1118 = vadd.f32 %v1069, %v1117
        %v1119 = vpop.f32.mrf.mxu0
        %v1120 = vadd.f32 %v1071, %v1119
        %1121 = vmatmul.bf16.gmra.mxu0 %v600
        %v1122 = vpop.f32.mrf.mxu0
        %v1123 = vadd.f32 %v1074, %v1122
        %v1124 = vpop.f32.mrf.mxu0
        %v1125 = vadd.f32 %v1076, %v1124
        %1126 = vmatmul.bf16.gmra.mxu0 %v604
        %v1127 = vpop.f32.mrf.mxu0
        %v1128 = vadd.f32 %v1079, %v1127
        %v1129 = vpop.f32.mrf.mxu0
        %v1130 = vadd.f32 %v1081, %v1129
        %1131 = vmatmul.bf16.gmra.mxu0 %v608
        %v1132 = vpop.f32.mrf.mxu0
        %v1133 = vadd.f32 %v1084, %v1132
        %v1134 = vpop.f32.mrf.mxu0
        %v1135 = vadd.f32 %v1086, %v1134
        %1136 = vmatmul.bf16.gmra.mxu0 %v612
        %v1137 = vpop.f32.mrf.mxu0
        %v1138 = vadd.f32 %v1089, %v1137
        %v1139 = vpop.f32.mrf.mxu0
        %v1140 = vadd.f32 %v1091, %v1139
        %1141 = vmatmul.bf16.gmra.mxu0 %v616
        %v1142 = vpop.f32.mrf.mxu0
        %v1143 = vadd.f32 %v1094, %v1142
        %v1144 = vpop.f32.mrf.mxu0
        %v1145 = vadd.f32 %v1096, %v1144
        %1146 = vmatmul.bf16.gmra.mxu0 %v620
        %v1147 = vpop.f32.mrf.mxu0
        %v1148 = vadd.f32 %v1099, %v1147
        %v1149 = vpop.f32.mrf.mxu0
        %v1150 = vadd.f32 %v1101, %v1149
        %1151 = vmatmul.bf16.gmra.mxu0 %v624
        %v1152 = vpop.f32.mrf.mxu0
        %v1153 = vadd.f32 %v1104, %v1152
        %v1154 = vpop.f32.mrf.mxu0
        %v1155 = vadd.f32 %v1106, %v1154
        %1156 = vdwg.mxu0
        %1157 = vmatpush.bf16.msra.mxu0 %v944
        %1158 = vmatpush.bf16.msra.mxu0 %v942
        %1159 = vmatpush.bf16.msra.mxu0 %v940
        %1160 = vmatpush.bf16.msra.mxu0 %v938
        %1161 = vmatpush.bf16.msra.mxu0 %v936
        %1162 = vmatpush.bf16.msra.mxu0 %v934
        %1163 = vmatpush.bf16.msra.mxu0 %v932
        %1164 = vmatpush.bf16.msra.mxu0 %v930
        %1165 = vmatmul.bf16.gmra.mxu0 %v597
        %v1166 = vpop.f32.mrf.mxu0
        %v1167 = vadd.f32 %v1118, %v1166
        %v1168 = vpop.f32.mrf.mxu0
        %v1169 = vadd.f32 %v1120, %v1168
        %1170 = vmatmul.bf16.gmra.mxu0 %v601
        %v1171 = vpop.f32.mrf.mxu0
        %v1172 = vadd.f32 %v1123, %v1171
        %v1173 = vpop.f32.mrf.mxu0
        %v1174 = vadd.f32 %v1125, %v1173
        %1175 = vmatmul.bf16.gmra.mxu0 %v605
        %v1176 = vpop.f32.mrf.mxu0
        %v1177 = vadd.f32 %v1128, %v1176
        %v1178 = vpop.f32.mrf.mxu0
        %v1179 = vadd.f32 %v1130, %v1178
        %1180 = vmatmul.bf16.gmra.mxu0 %v609
        %v1181 = vpop.f32.mrf.mxu0
        %v1182 = vadd.f32 %v1133, %v1181
        %v1183 = vpop.f32.mrf.mxu0
        %v1184 = vadd.f32 %v1135, %v1183
        %1185 = vmatmul.bf16.gmra.mxu0 %v613
        %v1186 = vpop.f32.mrf.mxu0
        %v1187 = vadd.f32 %v1138, %v1186
        %v1188 = vpop.f32.mrf.mxu0
        %v1189 = vadd.f32 %v1140, %v1188
        %1190 = vmatmul.bf16.gmra.mxu0 %v617
        %v1191 = vpop.f32.mrf.mxu0
        %v1192 = vadd.f32 %v1143, %v1191
        %v1193 = vpop.f32.mrf.mxu0
        %v1194 = vadd.f32 %v1145, %v1193
        %1195 = vmatmul.bf16.gmra.mxu0 %v621
        %v1196 = vpop.f32.mrf.mxu0
        %v1197 = vadd.f32 %v1148, %v1196
        %v1198 = vpop.f32.mrf.mxu0
        %v1199 = vadd.f32 %v1150, %v1198
        %1200 = vmatmul.bf16.gmra.mxu0 %v625
        %v1201 = vpop.f32.mrf.mxu0
        %v1202 = vadd.f32 %v1153, %v1201
        %v1203 = vpop.f32.mrf.mxu0
        %v1204 = vadd.f32 %v1155, %v1203
        %1205 = vdwg.mxu0
        %1206 = vmatpush.bf16.msra.mxu0 %v897
        %1207 = vmatpush.bf16.msra.mxu0 %v895
        %1208 = vmatpush.bf16.msra.mxu0 %v893
        %1209 = vmatpush.bf16.msra.mxu0 %v891
        %1210 = vmatpush.bf16.msra.mxu0 %v889
        %1211 = vmatpush.bf16.msra.mxu0 %v887
        %1212 = vmatpush.bf16.msra.mxu0 %v885
        %1213 = vmatpush.bf16.msra.mxu0 %v883
        %1214 = vmatmul.bf16.gmra.mxu0 %v594
        %v1215 = vpop.f32.mrf.mxu0
        %v1216 = vadd.f32 0.0, %v1215
        %v1217 = vpop.f32.mrf.mxu0
        %v1218 = vadd.f32 0.0, %v1217
        %1219 = vmatmul.bf16.gmra.mxu0 %v598
        %v1220 = vpop.f32.mrf.mxu0
        %v1221 = vadd.f32 0.0, %v1220
        %v1222 = vpop.f32.mrf.mxu0
        %v1223 = vadd.f32 0.0, %v1222
        %1224 = vmatmul.bf16.gmra.mxu0 %v602
        %v1225 = vpop.f32.mrf.mxu0
        %v1226 = vadd.f32 0.0, %v1225
        %v1227 = vpop.f32.mrf.mxu0
        %v1228 = vadd.f32 0.0, %v1227
        %1229 = vmatmul.bf16.gmra.mxu0 %v606
        %v1230 = vpop.f32.mrf.mxu0
        %v1231 = vadd.f32 0.0, %v1230
        %v1232 = vpop.f32.mrf.mxu0
        %v1233 = vadd.f32 0.0, %v1232
        %1234 = vmatmul.bf16.gmra.mxu0 %v610
        %v1235 = vpop.f32.mrf.mxu0
        %v1236 = vadd.f32 0.0, %v1235
        %v1237 = vpop.f32.mrf.mxu0
        %v1238 = vadd.f32 0.0, %v1237
        %1239 = vmatmul.bf16.gmra.mxu0 %v614
        %v1240 = vpop.f32.mrf.mxu0
        %v1241 = vadd.f32 0.0, %v1240
        %v1242 = vpop.f32.mrf.mxu0
        %v1243 = vadd.f32 0.0, %v1242
        %1244 = vmatmul.bf16.gmra.mxu0 %v618
        %v1245 = vpop.f32.mrf.mxu0
        %v1246 = vadd.f32 0.0, %v1245
        %v1247 = vpop.f32.mrf.mxu0
        %v1248 = vadd.f32 0.0, %v1247
        %1249 = vmatmul.bf16.gmra.mxu0 %v622
        %v1250 = vpop.f32.mrf.mxu0
        %v1251 = vadd.f32 0.0, %v1250
        %v1252 = vpop.f32.mrf.mxu0
        %v1253 = vadd.f32 0.0, %v1252
        %1254 = vdwg.mxu0
        %1255 = vmatpush.bf16.msra.mxu0 %v913
        %1256 = vmatpush.bf16.msra.mxu0 %v911
        %1257 = vmatpush.bf16.msra.mxu0 %v909
        %1258 = vmatpush.bf16.msra.mxu0 %v907
        %1259 = vmatpush.bf16.msra.mxu0 %v905
        %1260 = vmatpush.bf16.msra.mxu0 %v903
        %1261 = vmatpush.bf16.msra.mxu0 %v901
        %1262 = vmatpush.bf16.msra.mxu0 %v899
        %1263 = vmatmul.bf16.gmra.mxu0 %v595
        %v1264 = vpop.f32.mrf.mxu0
        %v1265 = vadd.f32 %v1216, %v1264
        %v1266 = vpop.f32.mrf.mxu0
        %v1267 = vadd.f32 %v1218, %v1266
        %1268 = vmatmul.bf16.gmra.mxu0 %v599
        %v1269 = vpop.f32.mrf.mxu0
        %v1270 = vadd.f32 %v1221, %v1269
        %v1271 = vpop.f32.mrf.mxu0
        %v1272 = vadd.f32 %v1223, %v1271
        %1273 = vmatmul.bf16.gmra.mxu0 %v603
        %v1274 = vpop.f32.mrf.mxu0
        %v1275 = vadd.f32 %v1226, %v1274
        %v1276 = vpop.f32.mrf.mxu0
        %v1277 = vadd.f32 %v1228, %v1276
        %1278 = vmatmul.bf16.gmra.mxu0 %v607
        %v1279 = vpop.f32.mrf.mxu0
        %v1280 = vadd.f32 %v1231, %v1279
        %v1281 = vpop.f32.mrf.mxu0
        %v1282 = vadd.f32 %v1233, %v1281
        %1283 = vmatmul.bf16.gmra.mxu0 %v611
        %v1284 = vpop.f32.mrf.mxu0
        %v1285 = vadd.f32 %v1236, %v1284
        %v1286 = vpop.f32.mrf.mxu0
        %v1287 = vadd.f32 %v1238, %v1286
        %1288 = vmatmul.bf16.gmra.mxu0 %v615
        %v1289 = vpop.f32.mrf.mxu0
        %v1290 = vadd.f32 %v1241, %v1289
        %v1291 = vpop.f32.mrf.mxu0
        %v1292 = vadd.f32 %v1243, %v1291
        %1293 = vmatmul.bf16.gmra.mxu0 %v619
        %v1294 = vpop.f32.mrf.mxu0
        %v1295 = vadd.f32 %v1246, %v1294
        %v1296 = vpop.f32.mrf.mxu0
        %v1297 = vadd.f32 %v1248, %v1296
        %1298 = vmatmul.bf16.gmra.mxu0 %v623
        %v1299 = vpop.f32.mrf.mxu0
        %v1300 = vadd.f32 %v1251, %v1299
        %v1301 = vpop.f32.mrf.mxu0
        %v1302 = vadd.f32 %v1253, %v1301
        %1303 = vdwg.mxu0
        %1304 = vmatpush.bf16.msra.mxu0 %v929
        %1305 = vmatpush.bf16.msra.mxu0 %v927
        %1306 = vmatpush.bf16.msra.mxu0 %v925
        %1307 = vmatpush.bf16.msra.mxu0 %v923
        %1308 = vmatpush.bf16.msra.mxu0 %v921
        %1309 = vmatpush.bf16.msra.mxu0 %v919
        %1310 = vmatpush.bf16.msra.mxu0 %v917
        %1311 = vmatpush.bf16.msra.mxu0 %v915
        %1312 = vmatmul.bf16.gmra.mxu0 %v596
        %v1313 = vpop.f32.mrf.mxu0
        %v1314 = vadd.f32 %v1265, %v1313
        %v1315 = vpop.f32.mrf.mxu0
        %v1316 = vadd.f32 %v1267, %v1315
        %1317 = vmatmul.bf16.gmra.mxu0 %v600
        %v1318 = vpop.f32.mrf.mxu0
        %v1319 = vadd.f32 %v1270, %v1318
        %v1320 = vpop.f32.mrf.mxu0
        %v1321 = vadd.f32 %v1272, %v1320
        %1322 = vmatmul.bf16.gmra.mxu0 %v604
        %v1323 = vpop.f32.mrf.mxu0
        %v1324 = vadd.f32 %v1275, %v1323
        %v1325 = vpop.f32.mrf.mxu0
        %v1326 = vadd.f32 %v1277, %v1325
        %1327 = vmatmul.bf16.gmra.mxu0 %v608
        %v1328 = vpop.f32.mrf.mxu0
        %v1329 = vadd.f32 %v1280, %v1328
        %v1330 = vpop.f32.mrf.mxu0
        %v1331 = vadd.f32 %v1282, %v1330
        %1332 = vmatmul.bf16.gmra.mxu0 %v612
        %v1333 = vpop.f32.mrf.mxu0
        %v1334 = vadd.f32 %v1285, %v1333
        %v1335 = vpop.f32.mrf.mxu0
        %v1336 = vadd.f32 %v1287, %v1335
        %1337 = vmatmul.bf16.gmra.mxu0 %v616
        %v1338 = vpop.f32.mrf.mxu0
        %v1339 = vadd.f32 %v1290, %v1338
        %v1340 = vpop.f32.mrf.mxu0
        %v1341 = vadd.f32 %v1292, %v1340
        %1342 = vmatmul.bf16.gmra.mxu0 %v620
        %v1343 = vpop.f32.mrf.mxu0
        %v1344 = vadd.f32 %v1295, %v1343
        %v1345 = vpop.f32.mrf.mxu0
        %v1346 = vadd.f32 %v1297, %v1345
        %1347 = vmatmul.bf16.gmra.mxu0 %v624
        %v1348 = vpop.f32.mrf.mxu0
        %v1349 = vadd.f32 %v1300, %v1348
        %v1350 = vpop.f32.mrf.mxu0
        %v1351 = vadd.f32 %v1302, %v1350
        %1352 = vdwg.mxu0
        %1353 = vmatpush.bf16.msra.mxu0 %v945
        %1354 = vmatpush.bf16.msra.mxu0 %v943
        %1355 = vmatpush.bf16.msra.mxu0 %v941
        %1356 = vmatpush.bf16.msra.mxu0 %v939
        %1357 = vmatpush.bf16.msra.mxu0 %v937
        %1358 = vmatpush.bf16.msra.mxu0 %v935
        %1359 = vmatpush.bf16.msra.mxu0 %v933
        %1360 = vmatpush.bf16.msra.mxu0 %v931
        %1361 = vmatmul.bf16.gmra.mxu0 %v597
        %v1362 = vpop.f32.mrf.mxu0
        %v1363 = vadd.f32 %v1314, %v1362
        %v1364 = vpop.f32.mrf.mxu0
        %v1365 = vadd.f32 %v1316, %v1364
        %1366 = vmatmul.bf16.gmra.mxu0 %v601
        %v1367 = vpop.f32.mrf.mxu0
        %v1368 = vadd.f32 %v1319, %v1367
        %v1369 = vpop.f32.mrf.mxu0
        %v1370 = vadd.f32 %v1321, %v1369
        %1371 = vmatmul.bf16.gmra.mxu0 %v605
        %v1372 = vpop.f32.mrf.mxu0
        %v1373 = vadd.f32 %v1324, %v1372
        %v1374 = vpop.f32.mrf.mxu0
        %v1375 = vadd.f32 %v1326, %v1374
        %1376 = vmatmul.bf16.gmra.mxu0 %v609
        %v1377 = vpop.f32.mrf.mxu0
        %v1378 = vadd.f32 %v1329, %v1377
        %v1379 = vpop.f32.mrf.mxu0
        %v1380 = vadd.f32 %v1331, %v1379
        %1381 = vmatmul.bf16.gmra.mxu0 %v613
        %v1382 = vpop.f32.mrf.mxu0
        %v1383 = vadd.f32 %v1334, %v1382
        %v1384 = vpop.f32.mrf.mxu0
        %v1385 = vadd.f32 %v1336, %v1384
        %1386 = vmatmul.bf16.gmra.mxu0 %v617
        %v1387 = vpop.f32.mrf.mxu0
        %v1388 = vadd.f32 %v1339, %v1387
        %v1389 = vpop.f32.mrf.mxu0
        %v1390 = vadd.f32 %v1341, %v1389
        %1391 = vmatmul.bf16.gmra.mxu0 %v621
        %v1392 = vpop.f32.mrf.mxu0
        %v1393 = vadd.f32 %v1344, %v1392
        %v1394 = vpop.f32.mrf.mxu0
        %v1395 = vadd.f32 %v1346, %v1394
        %1396 = vmatmul.bf16.gmra.mxu0 %v625
        %v1397 = vpop.f32.mrf.mxu0
        %v1398 = vadd.f32 %v1349, %v1397
        %v1399 = vpop.f32.mrf.mxu0
        %v1400 = vadd.f32 %v1351, %v1399
        %1401 = vdwg.mxu0
        %v1402 = vpack.c.bf16 %v1169, %v1167
        %v1403 = vpack.c.bf16 %v1365, %v1363
        %v1404 = vpack.c.bf16 %v1174, %v1172
        %v1405 = vpack.c.bf16 %v1370, %v1368
        %v1406 = vpack.c.bf16 %v1179, %v1177
        %v1407 = vpack.c.bf16 %v1375, %v1373
        %v1408 = vpack.c.bf16 %v1184, %v1182
        %v1409 = vpack.c.bf16 %v1380, %v1378
        %v1410 = vpack.c.bf16 %v1189, %v1187
        %v1411 = vpack.c.bf16 %v1385, %v1383
        %v1412 = vpack.c.bf16 %v1194, %v1192
        %v1413 = vpack.c.bf16 %v1390, %v1388
        %v1414 = vpack.c.bf16 %v1199, %v1197
        %v1415 = vpack.c.bf16 %v1395, %v1393
        %v1416 = vpack.c.bf16 %v1204, %v1202
        %v1417 = vpack.c.bf16 %v1400, %v1398
        %v1418 = vld [vmem:[#allocation2] sm:$0xff]
        %v1419 = vld [vmem:[#allocation2 + $0x8] sm:$0xff]
        %v1420 = vld [vmem:[#allocation2 + $0x10] sm:$0xff]
        %v1421 = vld [vmem:[#allocation2 + $0x18] sm:$0xff]
        %v1422 = vld [vmem:[#allocation2 + $0x20] sm:$0xff]
        %v1423 = vld [vmem:[#allocation2 + $0x28] sm:$0xff]
        %v1424 = vld [vmem:[#allocation2 + $0x30] sm:$0xff]
        %v1425 = vld [vmem:[#allocation2 + $0x38] sm:$0xff]
        %v1426 = vld [vmem:[#allocation2 + $0x40] sm:$0xff]
        %v1427 = vld [vmem:[#allocation2 + $0x48] sm:$0xff]
        %v1428 = vld [vmem:[#allocation2 + $0x50] sm:$0xff]
        %v1429 = vld [vmem:[#allocation2 + $0x58] sm:$0xff]
        %v1430 = vld [vmem:[#allocation2 + $0x60] sm:$0xff]
        %v1431 = vld [vmem:[#allocation2 + $0x68] sm:$0xff]
        %v1432 = vld [vmem:[#allocation2 + $0x70] sm:$0xff]
        %v1433 = vld [vmem:[#allocation2 + $0x78] sm:$0xff]
        %v1434 = vld [vmem:[#allocation2 + $0x80] sm:$0xff]
        %v1435 = vld [vmem:[#allocation2 + $0x88] sm:$0xff]
        %v1436 = vld [vmem:[#allocation2 + $0x90] sm:$0xff]
        %v1437 = vld [vmem:[#allocation2 + $0x98] sm:$0xff]
        %v1438 = vld [vmem:[#allocation2 + $0xa0] sm:$0xff]
        %v1439 = vld [vmem:[#allocation2 + $0xa8] sm:$0xff]
        %v1440 = vld [vmem:[#allocation2 + $0xb0] sm:$0xff]
        %v1441 = vld [vmem:[#allocation2 + $0xb8] sm:$0xff]
        %v1442 = vld [vmem:[#allocation2 + $0xc0] sm:$0xff]
        %v1443 = vld [vmem:[#allocation2 + $0xc8] sm:$0xff]
        %v1444 = vld [vmem:[#allocation2 + $0xd0] sm:$0xff]
        %v1445 = vld [vmem:[#allocation2 + $0xd8] sm:$0xff]
        %v1446 = vld [vmem:[#allocation2 + $0xe0] sm:$0xff]
        %v1447 = vld [vmem:[#allocation2 + $0xe8] sm:$0xff]
        %v1448 = vld [vmem:[#allocation2 + $0xf0] sm:$0xff]
        %v1449 = vld [vmem:[#allocation2 + $0xf8] sm:$0xff]
        %v1450 = vld [vmem:[#allocation2 + $0x100] sm:$0xff]
        %v1451 = vld [vmem:[#allocation2 + $0x108] sm:$0xff]
        %v1452 = vld [vmem:[#allocation2 + $0x110] sm:$0xff]
        %v1453 = vld [vmem:[#allocation2 + $0x118] sm:$0xff]
        %v1454 = vld [vmem:[#allocation2 + $0x120] sm:$0xff]
        %v1455 = vld [vmem:[#allocation2 + $0x128] sm:$0xff]
        %v1456 = vld [vmem:[#allocation2 + $0x130] sm:$0xff]
        %v1457 = vld [vmem:[#allocation2 + $0x138] sm:$0xff]
        %v1458 = vld [vmem:[#allocation2 + $0x140] sm:$0xff]
        %v1459 = vld [vmem:[#allocation2 + $0x148] sm:$0xff]
        %v1460 = vld [vmem:[#allocation2 + $0x150] sm:$0xff]
        %v1461 = vld [vmem:[#allocation2 + $0x158] sm:$0xff]
        %v1462 = vld [vmem:[#allocation2 + $0x160] sm:$0xff]
        %v1463 = vld [vmem:[#allocation2 + $0x168] sm:$0xff]
        %v1464 = vld [vmem:[#allocation2 + $0x170] sm:$0xff]
        %v1465 = vld [vmem:[#allocation2 + $0x178] sm:$0xff]
        %v1466 = vld [vmem:[#allocation2 + $0x180] sm:$0xff]
        %v1467 = vld [vmem:[#allocation2 + $0x188] sm:$0xff]
        %v1468 = vld [vmem:[#allocation2 + $0x190] sm:$0xff]
        %v1469 = vld [vmem:[#allocation2 + $0x198] sm:$0xff]
        %v1470 = vld [vmem:[#allocation2 + $0x1a0] sm:$0xff]
        %v1471 = vld [vmem:[#allocation2 + $0x1a8] sm:$0xff]
        %v1472 = vld [vmem:[#allocation2 + $0x1b0] sm:$0xff]
        %v1473 = vld [vmem:[#allocation2 + $0x1b8] sm:$0xff]
        %v1474 = vld [vmem:[#allocation2 + $0x1c0] sm:$0xff]
        %v1475 = vld [vmem:[#allocation2 + $0x1c8] sm:$0xff]
        %v1476 = vld [vmem:[#allocation2 + $0x1d0] sm:$0xff]
        %v1477 = vld [vmem:[#allocation2 + $0x1d8] sm:$0xff]
        %v1478 = vld [vmem:[#allocation2 + $0x1e0] sm:$0xff]
        %v1479 = vld [vmem:[#allocation2 + $0x1e8] sm:$0xff]
        %v1480 = vld [vmem:[#allocation2 + $0x1f0] sm:$0xff]
        %v1481 = vld [vmem:[#allocation2 + $0x1f8] sm:$0xff]
        %v1482 = vld [vmem:[#allocation5] sm:$0xf]
        %v1484 = vperm.slane %v1482, 0
        %v1485 = vperm.slane %v1482, 1
        %v1486 = vperm.slane %v1482, 2
        %v1487 = vperm.slane %v1482, 3
        %v1556 = vunpack.c.l.b16 %v1418
        %v1557 = vunpack.c.h.b16 %v1418
        %v1558 = vunpack.c.l.b16 %v1419
        %v1559 = vunpack.c.h.b16 %v1419
        %v1560 = vunpack.c.l.b16 %v1420
        %v1561 = vunpack.c.h.b16 %v1420
        %v1562 = vunpack.c.l.b16 %v1421
        %v1563 = vunpack.c.h.b16 %v1421
        %v1564 = vunpack.c.l.b16 %v1422
        %v1565 = vunpack.c.h.b16 %v1422
        %v1566 = vunpack.c.l.b16 %v1423
        %v1567 = vunpack.c.h.b16 %v1423
        %v1568 = vunpack.c.l.b16 %v1424
        %v1569 = vunpack.c.h.b16 %v1424
        %v1570 = vunpack.c.l.b16 %v1425
        %v1571 = vunpack.c.h.b16 %v1425
        %v1572 = vunpack.c.l.b16 %v1426
        %v1573 = vunpack.c.h.b16 %v1426
        %v1574 = vunpack.c.l.b16 %v1427
        %v1575 = vunpack.c.h.b16 %v1427
        %v1576 = vunpack.c.l.b16 %v1428
        %v1577 = vunpack.c.h.b16 %v1428
        %v1578 = vunpack.c.l.b16 %v1429
        %v1579 = vunpack.c.h.b16 %v1429
        %v1580 = vunpack.c.l.b16 %v1430
        %v1581 = vunpack.c.h.b16 %v1430
        %v1582 = vunpack.c.l.b16 %v1431
        %v1583 = vunpack.c.h.b16 %v1431
        %v1584 = vunpack.c.l.b16 %v1432
        %v1585 = vunpack.c.h.b16 %v1432
        %v1586 = vunpack.c.l.b16 %v1433
        %v1587 = vunpack.c.h.b16 %v1433
        %v1588 = vunpack.c.l.b16 %v1434
        %v1589 = vunpack.c.h.b16 %v1434
        %v1590 = vunpack.c.l.b16 %v1435
        %v1591 = vunpack.c.h.b16 %v1435
        %v1592 = vunpack.c.l.b16 %v1436
        %v1593 = vunpack.c.h.b16 %v1436
        %v1594 = vunpack.c.l.b16 %v1437
        %v1595 = vunpack.c.h.b16 %v1437
        %v1596 = vunpack.c.l.b16 %v1438
        %v1597 = vunpack.c.h.b16 %v1438
        %v1598 = vunpack.c.l.b16 %v1439
        %v1599 = vunpack.c.h.b16 %v1439
        %v1600 = vunpack.c.l.b16 %v1440
        %v1601 = vunpack.c.h.b16 %v1440
        %v1602 = vunpack.c.l.b16 %v1441
        %v1603 = vunpack.c.h.b16 %v1441
        %v1604 = vunpack.c.l.b16 %v1442
        %v1605 = vunpack.c.h.b16 %v1442
        %v1606 = vunpack.c.l.b16 %v1443
        %v1607 = vunpack.c.h.b16 %v1443
        %v1608 = vunpack.c.l.b16 %v1444
        %v1609 = vunpack.c.h.b16 %v1444
        %v1610 = vunpack.c.l.b16 %v1445
        %v1611 = vunpack.c.h.b16 %v1445
        %v1612 = vunpack.c.l.b16 %v1446
        %v1613 = vunpack.c.h.b16 %v1446
        %v1614 = vunpack.c.l.b16 %v1447
        %v1615 = vunpack.c.h.b16 %v1447
        %v1616 = vunpack.c.l.b16 %v1448
        %v1617 = vunpack.c.h.b16 %v1448
        %v1618 = vunpack.c.l.b16 %v1449
        %v1619 = vunpack.c.h.b16 %v1449
        %v1620 = vunpack.c.l.b16 %v1450
        %v1621 = vunpack.c.h.b16 %v1450
        %v1622 = vunpack.c.l.b16 %v1451
        %v1623 = vunpack.c.h.b16 %v1451
        %v1624 = vunpack.c.l.b16 %v1452
        %v1625 = vunpack.c.h.b16 %v1452
        %v1626 = vunpack.c.l.b16 %v1453
        %v1627 = vunpack.c.h.b16 %v1453
        %v1628 = vunpack.c.l.b16 %v1454
        %v1629 = vunpack.c.h.b16 %v1454
        %v1630 = vunpack.c.l.b16 %v1455
        %v1631 = vunpack.c.h.b16 %v1455
        %v1632 = vunpack.c.l.b16 %v1456
        %v1633 = vunpack.c.h.b16 %v1456
        %v1634 = vunpack.c.l.b16 %v1457
        %v1635 = vunpack.c.h.b16 %v1457
        %v1636 = vunpack.c.l.b16 %v1458
        %v1637 = vunpack.c.h.b16 %v1458
        %v1638 = vunpack.c.l.b16 %v1459
        %v1639 = vunpack.c.h.b16 %v1459
        %v1640 = vunpack.c.l.b16 %v1460
        %v1641 = vunpack.c.h.b16 %v1460
        %v1642 = vunpack.c.l.b16 %v1461
        %v1643 = vunpack.c.h.b16 %v1461
        %v1644 = vunpack.c.l.b16 %v1462
        %v1645 = vunpack.c.h.b16 %v1462
        %v1646 = vunpack.c.l.b16 %v1463
        %v1647 = vunpack.c.h.b16 %v1463
        %v1648 = vunpack.c.l.b16 %v1464
        %v1649 = vunpack.c.h.b16 %v1464
        %v1650 = vunpack.c.l.b16 %v1465
        %v1651 = vunpack.c.h.b16 %v1465
        %v1652 = vunpack.c.l.b16 %v1466
        %v1653 = vunpack.c.h.b16 %v1466
        %v1654 = vunpack.c.l.b16 %v1467
        %v1655 = vunpack.c.h.b16 %v1467
        %v1656 = vunpack.c.l.b16 %v1468
        %v1657 = vunpack.c.h.b16 %v1468
        %v1658 = vunpack.c.l.b16 %v1469
        %v1659 = vunpack.c.h.b16 %v1469
        %v1660 = vunpack.c.l.b16 %v1470
        %v1661 = vunpack.c.h.b16 %v1470
        %v1662 = vunpack.c.l.b16 %v1471
        %v1663 = vunpack.c.h.b16 %v1471
        %v1664 = vunpack.c.l.b16 %v1472
        %v1665 = vunpack.c.h.b16 %v1472
        %v1666 = vunpack.c.l.b16 %v1473
        %v1667 = vunpack.c.h.b16 %v1473
        %v1668 = vunpack.c.l.b16 %v1474
        %v1669 = vunpack.c.h.b16 %v1474
        %v1670 = vunpack.c.l.b16 %v1475
        %v1671 = vunpack.c.h.b16 %v1475
        %v1672 = vunpack.c.l.b16 %v1476
        %v1673 = vunpack.c.h.b16 %v1476
        %v1674 = vunpack.c.l.b16 %v1477
        %v1675 = vunpack.c.h.b16 %v1477
        %v1676 = vunpack.c.l.b16 %v1478
        %v1677 = vunpack.c.h.b16 %v1478
        %v1678 = vunpack.c.l.b16 %v1479
        %v1679 = vunpack.c.h.b16 %v1479
        %v1680 = vunpack.c.l.b16 %v1480
        %v1681 = vunpack.c.h.b16 %v1480
        %v1682 = vunpack.c.l.b16 %v1481
        %v1683 = vunpack.c.h.b16 %v1481
        %v1684 = vpack.c.b16 %v1560, %v1556
        %v1685 = vpack.c.b16 %v1561, %v1557
        %v1686 = vpack.c.b16 %v1562, %v1558
        %v1687 = vpack.c.b16 %v1563, %v1559
        %v1688 = vpack.c.b16 %v1568, %v1564
        %v1689 = vpack.c.b16 %v1569, %v1565
        %v1690 = vpack.c.b16 %v1570, %v1566
        %v1691 = vpack.c.b16 %v1571, %v1567
        %v1692 = vpack.c.b16 %v1576, %v1572
        %v1693 = vpack.c.b16 %v1577, %v1573
        %v1694 = vpack.c.b16 %v1578, %v1574
        %v1695 = vpack.c.b16 %v1579, %v1575
        %v1696 = vpack.c.b16 %v1584, %v1580
        %v1697 = vpack.c.b16 %v1585, %v1581
        %v1698 = vpack.c.b16 %v1586, %v1582
        %v1699 = vpack.c.b16 %v1587, %v1583
        %v1700 = vpack.c.b16 %v1592, %v1588
        %v1701 = vpack.c.b16 %v1593, %v1589
        %v1702 = vpack.c.b16 %v1594, %v1590
        %v1703 = vpack.c.b16 %v1595, %v1591
        %v1704 = vpack.c.b16 %v1600, %v1596
        %v1705 = vpack.c.b16 %v1601, %v1597
        %v1706 = vpack.c.b16 %v1602, %v1598
        %v1707 = vpack.c.b16 %v1603, %v1599
        %v1708 = vpack.c.b16 %v1608, %v1604
        %v1709 = vpack.c.b16 %v1609, %v1605
        %v1710 = vpack.c.b16 %v1610, %v1606
        %v1711 = vpack.c.b16 %v1611, %v1607
        %v1712 = vpack.c.b16 %v1616, %v1612
        %v1713 = vpack.c.b16 %v1617, %v1613
        %v1714 = vpack.c.b16 %v1618, %v1614
        %v1715 = vpack.c.b16 %v1619, %v1615
        %v1716 = vpack.c.b16 %v1624, %v1620
        %v1717 = vpack.c.b16 %v1625, %v1621
        %v1718 = vpack.c.b16 %v1626, %v1622
        %v1719 = vpack.c.b16 %v1627, %v1623
        %v1720 = vpack.c.b16 %v1632, %v1628
        %v1721 = vpack.c.b16 %v1633, %v1629
        %v1722 = vpack.c.b16 %v1634, %v1630
        %v1723 = vpack.c.b16 %v1635, %v1631
        %v1724 = vpack.c.b16 %v1640, %v1636
        %v1725 = vpack.c.b16 %v1641, %v1637
        %v1726 = vpack.c.b16 %v1642, %v1638
        %v1727 = vpack.c.b16 %v1643, %v1639
        %v1728 = vpack.c.b16 %v1648, %v1644
        %v1729 = vpack.c.b16 %v1649, %v1645
        %v1730 = vpack.c.b16 %v1650, %v1646
        %v1731 = vpack.c.b16 %v1651, %v1647
        %v1732 = vpack.c.b16 %v1656, %v1652
        %v1733 = vpack.c.b16 %v1657, %v1653
        %v1734 = vpack.c.b16 %v1658, %v1654
        %v1735 = vpack.c.b16 %v1659, %v1655
        %v1736 = vpack.c.b16 %v1664, %v1660
        %v1737 = vpack.c.b16 %v1665, %v1661
        %v1738 = vpack.c.b16 %v1666, %v1662
        %v1739 = vpack.c.b16 %v1667, %v1663
        %v1740 = vpack.c.b16 %v1672, %v1668
        %v1741 = vpack.c.b16 %v1673, %v1669
        %v1742 = vpack.c.b16 %v1674, %v1670
        %v1743 = vpack.c.b16 %v1675, %v1671
        %v1744 = vpack.c.b16 %v1680, %v1676
        %v1745 = vpack.c.b16 %v1681, %v1677
        %v1746 = vpack.c.b16 %v1682, %v1678
        %v1747 = vpack.c.b16 %v1683, %v1679
        %1812 = vmatpush.bf16.msra.mxu0 %v1712
        %1813 = vmatpush.bf16.msra.mxu0 %v1708
        %1814 = vmatpush.bf16.msra.mxu0 %v1704
        %1815 = vmatpush.bf16.msra.mxu0 %v1700
        %1816 = vmatpush.bf16.msra.mxu0 %v1696
        %1817 = vmatpush.bf16.msra.mxu0 %v1692
        %1818 = vmatpush.bf16.msra.mxu0 %v1688
        %1819 = vmatpush.bf16.msra.mxu0 %v1684
        %1820 = vmatmul.bf16.gmra.mxu0 %v1402
        %v1821 = vpop.f32.mrf.mxu0
        %v1822 = vadd.f32 %v1484, %v1821
        %v1823 = vpop.f32.mrf.mxu0
        %v1824 = vadd.f32 %v1484, %v1823
        %1825 = vmatmul.bf16.gmra.mxu0 %v1404
        %v1826 = vpop.f32.mrf.mxu0
        %v1827 = vadd.f32 %v1484, %v1826
        %v1828 = vpop.f32.mrf.mxu0
        %v1829 = vadd.f32 %v1484, %v1828
        %1830 = vmatmul.bf16.gmra.mxu0 %v1406
        %v1831 = vpop.f32.mrf.mxu0
        %v1832 = vadd.f32 %v1484, %v1831
        %v1833 = vpop.f32.mrf.mxu0
        %v1834 = vadd.f32 %v1484, %v1833
        %1835 = vmatmul.bf16.gmra.mxu0 %v1408
        %v1836 = vpop.f32.mrf.mxu0
        %v1837 = vadd.f32 %v1484, %v1836
        %v1838 = vpop.f32.mrf.mxu0
        %v1839 = vadd.f32 %v1484, %v1838
        %1840 = vmatmul.bf16.gmra.mxu0 %v1410
        %v1841 = vpop.f32.mrf.mxu0
        %v1842 = vadd.f32 %v1484, %v1841
        %v1843 = vpop.f32.mrf.mxu0
        %v1844 = vadd.f32 %v1484, %v1843
        %1845 = vmatmul.bf16.gmra.mxu0 %v1412
        %v1846 = vpop.f32.mrf.mxu0
        %v1847 = vadd.f32 %v1484, %v1846
        %v1848 = vpop.f32.mrf.mxu0
        %v1849 = vadd.f32 %v1484, %v1848
        %1850 = vmatmul.bf16.gmra.mxu0 %v1414
        %v1851 = vpop.f32.mrf.mxu0
        %v1852 = vadd.f32 %v1484, %v1851
        %v1853 = vpop.f32.mrf.mxu0
        %v1854 = vadd.f32 %v1484, %v1853
        %1855 = vmatmul.bf16.gmra.mxu0 %v1416
        %v1856 = vpop.f32.mrf.mxu0
        %v1857 = vadd.f32 %v1484, %v1856
        %v1858 = vpop.f32.mrf.mxu0
        %v1859 = vadd.f32 %v1484, %v1858
        %1860 = vdwg.mxu0
        %1861 = vmatpush.bf16.msra.mxu0 %v1744
        %1862 = vmatpush.bf16.msra.mxu0 %v1740
        %1863 = vmatpush.bf16.msra.mxu0 %v1736
        %1864 = vmatpush.bf16.msra.mxu0 %v1732
        %1865 = vmatpush.bf16.msra.mxu0 %v1728
        %1866 = vmatpush.bf16.msra.mxu0 %v1724
        %1867 = vmatpush.bf16.msra.mxu0 %v1720
        %1868 = vmatpush.bf16.msra.mxu0 %v1716
        %1869 = vmatmul.bf16.gmra.mxu0 %v1403
        %v1870 = vpop.f32.mrf.mxu0
        %v1871 = vadd.f32 %v1822, %v1870
        %v1872 = vpop.f32.mrf.mxu0
        %v1873 = vadd.f32 %v1824, %v1872
        %1874 = vmatmul.bf16.gmra.mxu0 %v1405
        %v1875 = vpop.f32.mrf.mxu0
        %v1876 = vadd.f32 %v1827, %v1875
        %v1877 = vpop.f32.mrf.mxu0
        %v1878 = vadd.f32 %v1829, %v1877
        %1879 = vmatmul.bf16.gmra.mxu0 %v1407
        %v1880 = vpop.f32.mrf.mxu0
        %v1881 = vadd.f32 %v1832, %v1880
        %v1882 = vpop.f32.mrf.mxu0
        %v1883 = vadd.f32 %v1834, %v1882
        %1884 = vmatmul.bf16.gmra.mxu0 %v1409
        %v1885 = vpop.f32.mrf.mxu0
        %v1886 = vadd.f32 %v1837, %v1885
        %v1887 = vpop.f32.mrf.mxu0
        %v1888 = vadd.f32 %v1839, %v1887
        %1889 = vmatmul.bf16.gmra.mxu0 %v1411
        %v1890 = vpop.f32.mrf.mxu0
        %v1891 = vadd.f32 %v1842, %v1890
        %v1892 = vpop.f32.mrf.mxu0
        %v1893 = vadd.f32 %v1844, %v1892
        %1894 = vmatmul.bf16.gmra.mxu0 %v1413
        %v1895 = vpop.f32.mrf.mxu0
        %v1896 = vadd.f32 %v1847, %v1895
        %v1897 = vpop.f32.mrf.mxu0
        %v1898 = vadd.f32 %v1849, %v1897
        %1899 = vmatmul.bf16.gmra.mxu0 %v1415
        %v1900 = vpop.f32.mrf.mxu0
        %v1901 = vadd.f32 %v1852, %v1900
        %v1902 = vpop.f32.mrf.mxu0
        %v1903 = vadd.f32 %v1854, %v1902
        %1904 = vmatmul.bf16.gmra.mxu0 %v1417
        %v1905 = vpop.f32.mrf.mxu0
        %v1906 = vadd.f32 %v1857, %v1905
        %v1907 = vpop.f32.mrf.mxu0
        %v1908 = vadd.f32 %v1859, %v1907
        %1909 = vdwg.mxu0
        %1910 = vmatpush.bf16.msra.mxu0 %v1713
        %1911 = vmatpush.bf16.msra.mxu0 %v1709
        %1912 = vmatpush.bf16.msra.mxu0 %v1705
        %1913 = vmatpush.bf16.msra.mxu0 %v1701
        %1914 = vmatpush.bf16.msra.mxu0 %v1697
        %1915 = vmatpush.bf16.msra.mxu0 %v1693
        %1916 = vmatpush.bf16.msra.mxu0 %v1689
        %1917 = vmatpush.bf16.msra.mxu0 %v1685
        %1918 = vmatmul.bf16.gmra.mxu0 %v1402
        %v1919 = vpop.f32.mrf.mxu0
        %v1920 = vadd.f32 %v1485, %v1919
        %v1921 = vpop.f32.mrf.mxu0
        %v1922 = vadd.f32 %v1485, %v1921
        %1923 = vmatmul.bf16.gmra.mxu0 %v1404
        %v1924 = vpop.f32.mrf.mxu0
        %v1925 = vadd.f32 %v1485, %v1924
        %v1926 = vpop.f32.mrf.mxu0
        %v1927 = vadd.f32 %v1485, %v1926
        %1928 = vmatmul.bf16.gmra.mxu0 %v1406
        %v1929 = vpop.f32.mrf.mxu0
        %v1930 = vadd.f32 %v1485, %v1929
        %v1931 = vpop.f32.mrf.mxu0
        %v1932 = vadd.f32 %v1485, %v1931
        %1933 = vmatmul.bf16.gmra.mxu0 %v1408
        %v1934 = vpop.f32.mrf.mxu0
        %v1935 = vadd.f32 %v1485, %v1934
        %v1936 = vpop.f32.mrf.mxu0
        %v1937 = vadd.f32 %v1485, %v1936
        %1938 = vmatmul.bf16.gmra.mxu0 %v1410
        %v1939 = vpop.f32.mrf.mxu0
        %v1940 = vadd.f32 %v1485, %v1939
        %v1941 = vpop.f32.mrf.mxu0
        %v1942 = vadd.f32 %v1485, %v1941
        %1943 = vmatmul.bf16.gmra.mxu0 %v1412
        %v1944 = vpop.f32.mrf.mxu0
        %v1945 = vadd.f32 %v1485, %v1944
        %v1946 = vpop.f32.mrf.mxu0
        %v1947 = vadd.f32 %v1485, %v1946
        %1948 = vmatmul.bf16.gmra.mxu0 %v1414
        %v1949 = vpop.f32.mrf.mxu0
        %v1950 = vadd.f32 %v1485, %v1949
        %v1951 = vpop.f32.mrf.mxu0
        %v1952 = vadd.f32 %v1485, %v1951
        %1953 = vmatmul.bf16.gmra.mxu0 %v1416
        %v1954 = vpop.f32.mrf.mxu0
        %v1955 = vadd.f32 %v1485, %v1954
        %v1956 = vpop.f32.mrf.mxu0
        %v1957 = vadd.f32 %v1485, %v1956
        %1958 = vdwg.mxu0
        %1959 = vmatpush.bf16.msra.mxu0 %v1745
        %1960 = vmatpush.bf16.msra.mxu0 %v1741
        %1961 = vmatpush.bf16.msra.mxu0 %v1737
        %1962 = vmatpush.bf16.msra.mxu0 %v1733
        %1963 = vmatpush.bf16.msra.mxu0 %v1729
        %1964 = vmatpush.bf16.msra.mxu0 %v1725
        %1965 = vmatpush.bf16.msra.mxu0 %v1721
        %1966 = vmatpush.bf16.msra.mxu0 %v1717
        %1967 = vmatmul.bf16.gmra.mxu0 %v1403
        %v1968 = vpop.f32.mrf.mxu0
        %v1969 = vadd.f32 %v1920, %v1968
        %v1970 = vpop.f32.mrf.mxu0
        %v1971 = vadd.f32 %v1922, %v1970
        %1972 = vmatmul.bf16.gmra.mxu0 %v1405
        %v1973 = vpop.f32.mrf.mxu0
        %v1974 = vadd.f32 %v1925, %v1973
        %v1975 = vpop.f32.mrf.mxu0
        %v1976 = vadd.f32 %v1927, %v1975
        %1977 = vmatmul.bf16.gmra.mxu0 %v1407
        %v1978 = vpop.f32.mrf.mxu0
        %v1979 = vadd.f32 %v1930, %v1978
        %v1980 = vpop.f32.mrf.mxu0
        %v1981 = vadd.f32 %v1932, %v1980
        %1982 = vmatmul.bf16.gmra.mxu0 %v1409
        %v1983 = vpop.f32.mrf.mxu0
        %v1984 = vadd.f32 %v1935, %v1983
        %v1985 = vpop.f32.mrf.mxu0
        %v1986 = vadd.f32 %v1937, %v1985
        %1987 = vmatmul.bf16.gmra.mxu0 %v1411
        %v1988 = vpop.f32.mrf.mxu0
        %v1989 = vadd.f32 %v1940, %v1988
        %v1990 = vpop.f32.mrf.mxu0
        %v1991 = vadd.f32 %v1942, %v1990
        %1992 = vmatmul.bf16.gmra.mxu0 %v1413
        %v1993 = vpop.f32.mrf.mxu0
        %v1994 = vadd.f32 %v1945, %v1993
        %v1995 = vpop.f32.mrf.mxu0
        %v1996 = vadd.f32 %v1947, %v1995
        %1997 = vmatmul.bf16.gmra.mxu0 %v1415
        %v1998 = vpop.f32.mrf.mxu0
        %v1999 = vadd.f32 %v1950, %v1998
        %v2000 = vpop.f32.mrf.mxu0
        %v2001 = vadd.f32 %v1952, %v2000
        %2002 = vmatmul.bf16.gmra.mxu0 %v1417
        %v2003 = vpop.f32.mrf.mxu0
        %v2004 = vadd.f32 %v1955, %v2003
        %v2005 = vpop.f32.mrf.mxu0
        %v2006 = vadd.f32 %v1957, %v2005
        %2007 = vdwg.mxu0
        %2008 = vmatpush.bf16.msra.mxu0 %v1714
        %2009 = vmatpush.bf16.msra.mxu0 %v1710
        %2010 = vmatpush.bf16.msra.mxu0 %v1706
        %2011 = vmatpush.bf16.msra.mxu0 %v1702
        %2012 = vmatpush.bf16.msra.mxu0 %v1698
        %2013 = vmatpush.bf16.msra.mxu0 %v1694
        %2014 = vmatpush.bf16.msra.mxu0 %v1690
        %2015 = vmatpush.bf16.msra.mxu0 %v1686
        %2016 = vmatmul.bf16.gmra.mxu0 %v1402
        %v2017 = vpop.f32.mrf.mxu0
        %v2018 = vadd.f32 %v1486, %v2017
        %v2019 = vpop.f32.mrf.mxu0
        %v2020 = vadd.f32 %v1486, %v2019
        %2021 = vmatmul.bf16.gmra.mxu0 %v1404
        %v2022 = vpop.f32.mrf.mxu0
        %v2023 = vadd.f32 %v1486, %v2022
        %v2024 = vpop.f32.mrf.mxu0
        %v2025 = vadd.f32 %v1486, %v2024
        %2026 = vmatmul.bf16.gmra.mxu0 %v1406
        %v2027 = vpop.f32.mrf.mxu0
        %v2028 = vadd.f32 %v1486, %v2027
        %v2029 = vpop.f32.mrf.mxu0
        %v2030 = vadd.f32 %v1486, %v2029
        %2031 = vmatmul.bf16.gmra.mxu0 %v1408
        %v2032 = vpop.f32.mrf.mxu0
        %v2033 = vadd.f32 %v1486, %v2032
        %v2034 = vpop.f32.mrf.mxu0
        %v2035 = vadd.f32 %v1486, %v2034
        %2036 = vmatmul.bf16.gmra.mxu0 %v1410
        %v2037 = vpop.f32.mrf.mxu0
        %v2038 = vadd.f32 %v1486, %v2037
        %v2039 = vpop.f32.mrf.mxu0
        %v2040 = vadd.f32 %v1486, %v2039
        %2041 = vmatmul.bf16.gmra.mxu0 %v1412
        %v2042 = vpop.f32.mrf.mxu0
        %v2043 = vadd.f32 %v1486, %v2042
        %v2044 = vpop.f32.mrf.mxu0
        %v2045 = vadd.f32 %v1486, %v2044
        %2046 = vmatmul.bf16.gmra.mxu0 %v1414
        %v2047 = vpop.f32.mrf.mxu0
        %v2048 = vadd.f32 %v1486, %v2047
        %v2049 = vpop.f32.mrf.mxu0
        %v2050 = vadd.f32 %v1486, %v2049
        %2051 = vmatmul.bf16.gmra.mxu0 %v1416
        %v2052 = vpop.f32.mrf.mxu0
        %v2053 = vadd.f32 %v1486, %v2052
        %v2054 = vpop.f32.mrf.mxu0
        %v2055 = vadd.f32 %v1486, %v2054
        %2056 = vdwg.mxu0
        %2057 = vmatpush.bf16.msra.mxu0 %v1746
        %2058 = vmatpush.bf16.msra.mxu0 %v1742
        %2059 = vmatpush.bf16.msra.mxu0 %v1738
        %2060 = vmatpush.bf16.msra.mxu0 %v1734
        %2061 = vmatpush.bf16.msra.mxu0 %v1730
        %2062 = vmatpush.bf16.msra.mxu0 %v1726
        %2063 = vmatpush.bf16.msra.mxu0 %v1722
        %2064 = vmatpush.bf16.msra.mxu0 %v1718
        %2065 = vmatmul.bf16.gmra.mxu0 %v1403
        %v2066 = vpop.f32.mrf.mxu0
        %v2067 = vadd.f32 %v2018, %v2066
        %v2068 = vpop.f32.mrf.mxu0
        %v2069 = vadd.f32 %v2020, %v2068
        %2070 = vmatmul.bf16.gmra.mxu0 %v1405
        %v2071 = vpop.f32.mrf.mxu0
        %v2072 = vadd.f32 %v2023, %v2071
        %v2073 = vpop.f32.mrf.mxu0
        %v2074 = vadd.f32 %v2025, %v2073
        %2075 = vmatmul.bf16.gmra.mxu0 %v1407
        %v2076 = vpop.f32.mrf.mxu0
        %v2077 = vadd.f32 %v2028, %v2076
        %v2078 = vpop.f32.mrf.mxu0
        %v2079 = vadd.f32 %v2030, %v2078
        %2080 = vmatmul.bf16.gmra.mxu0 %v1409
        %v2081 = vpop.f32.mrf.mxu0
        %v2082 = vadd.f32 %v2033, %v2081
        %v2083 = vpop.f32.mrf.mxu0
        %v2084 = vadd.f32 %v2035, %v2083
        %2085 = vmatmul.bf16.gmra.mxu0 %v1411
        %v2086 = vpop.f32.mrf.mxu0
        %v2087 = vadd.f32 %v2038, %v2086
        %v2088 = vpop.f32.mrf.mxu0
        %v2089 = vadd.f32 %v2040, %v2088
        %2090 = vmatmul.bf16.gmra.mxu0 %v1413
        %v2091 = vpop.f32.mrf.mxu0
        %v2092 = vadd.f32 %v2043, %v2091
        %v2093 = vpop.f32.mrf.mxu0
        %v2094 = vadd.f32 %v2045, %v2093
        %2095 = vmatmul.bf16.gmra.mxu0 %v1415
        %v2096 = vpop.f32.mrf.mxu0
        %v2097 = vadd.f32 %v2048, %v2096
        %v2098 = vpop.f32.mrf.mxu0
        %v2099 = vadd.f32 %v2050, %v2098
        %2100 = vmatmul.bf16.gmra.mxu0 %v1417
        %v2101 = vpop.f32.mrf.mxu0
        %v2102 = vadd.f32 %v2053, %v2101
        %v2103 = vpop.f32.mrf.mxu0
        %v2104 = vadd.f32 %v2055, %v2103
        %2105 = vdwg.mxu0
        %2106 = vmatpush.bf16.msra.mxu0 %v1715
        %2107 = vmatpush.bf16.msra.mxu0 %v1711
        %2108 = vmatpush.bf16.msra.mxu0 %v1707
        %2109 = vmatpush.bf16.msra.mxu0 %v1703
        %2110 = vmatpush.bf16.msra.mxu0 %v1699
        %2111 = vmatpush.bf16.msra.mxu0 %v1695
        %2112 = vmatpush.bf16.msra.mxu0 %v1691
        %2113 = vmatpush.bf16.msra.mxu0 %v1687
        %2114 = vmatmul.bf16.gmra.mxu0 %v1402
        %v2115 = vpop.f32.mrf.mxu0
        %v2116 = vadd.f32 %v1487, %v2115
        %v2117 = vpop.f32.mrf.mxu0
        %v2118 = vadd.f32 %v1487, %v2117
        %2119 = vmatmul.bf16.gmra.mxu0 %v1404
        %v2120 = vpop.f32.mrf.mxu0
        %v2121 = vadd.f32 %v1487, %v2120
        %v2122 = vpop.f32.mrf.mxu0
        %v2123 = vadd.f32 %v1487, %v2122
        %2124 = vmatmul.bf16.gmra.mxu0 %v1406
        %v2125 = vpop.f32.mrf.mxu0
        %v2126 = vadd.f32 %v1487, %v2125
        %v2127 = vpop.f32.mrf.mxu0
        %v2128 = vadd.f32 %v1487, %v2127
        %2129 = vmatmul.bf16.gmra.mxu0 %v1408
        %v2130 = vpop.f32.mrf.mxu0
        %v2131 = vadd.f32 %v1487, %v2130
        %v2132 = vpop.f32.mrf.mxu0
        %v2133 = vadd.f32 %v1487, %v2132
        %2134 = vmatmul.bf16.gmra.mxu0 %v1410
        %v2135 = vpop.f32.mrf.mxu0
        %v2136 = vadd.f32 %v1487, %v2135
        %v2137 = vpop.f32.mrf.mxu0
        %v2138 = vadd.f32 %v1487, %v2137
        %2139 = vmatmul.bf16.gmra.mxu0 %v1412
        %v2140 = vpop.f32.mrf.mxu0
        %v2141 = vadd.f32 %v1487, %v2140
        %v2142 = vpop.f32.mrf.mxu0
        %v2143 = vadd.f32 %v1487, %v2142
        %2144 = vmatmul.bf16.gmra.mxu0 %v1414
        %v2145 = vpop.f32.mrf.mxu0
        %v2146 = vadd.f32 %v1487, %v2145
        %v2147 = vpop.f32.mrf.mxu0
        %v2148 = vadd.f32 %v1487, %v2147
        %2149 = vmatmul.bf16.gmra.mxu0 %v1416
        %v2150 = vpop.f32.mrf.mxu0
        %v2151 = vadd.f32 %v1487, %v2150
        %v2152 = vpop.f32.mrf.mxu0
        %v2153 = vadd.f32 %v1487, %v2152
        %2154 = vdwg.mxu0
        %2155 = vmatpush.bf16.msra.mxu0 %v1747
        %2156 = vmatpush.bf16.msra.mxu0 %v1743
        %2157 = vmatpush.bf16.msra.mxu0 %v1739
        %2158 = vmatpush.bf16.msra.mxu0 %v1735
        %2159 = vmatpush.bf16.msra.mxu0 %v1731
        %2160 = vmatpush.bf16.msra.mxu0 %v1727
        %2161 = vmatpush.bf16.msra.mxu0 %v1723
        %2162 = vmatpush.bf16.msra.mxu0 %v1719
        %2163 = vmatmul.bf16.gmra.mxu0 %v1403
        %v2164 = vpop.f32.mrf.mxu0
        %v2165 = vadd.f32 %v2116, %v2164
        %v2166 = vpop.f32.mrf.mxu0
        %v2167 = vadd.f32 %v2118, %v2166
        %2168 = vmatmul.bf16.gmra.mxu0 %v1405
        %v2169 = vpop.f32.mrf.mxu0
        %v2170 = vadd.f32 %v2121, %v2169
        %v2171 = vpop.f32.mrf.mxu0
        %v2172 = vadd.f32 %v2123, %v2171
        %2173 = vmatmul.bf16.gmra.mxu0 %v1407
        %v2174 = vpop.f32.mrf.mxu0
        %v2175 = vadd.f32 %v2126, %v2174
        %v2176 = vpop.f32.mrf.mxu0
        %v2177 = vadd.f32 %v2128, %v2176
        %2178 = vmatmul.bf16.gmra.mxu0 %v1409
        %v2179 = vpop.f32.mrf.mxu0
        %v2180 = vadd.f32 %v2131, %v2179
        %v2181 = vpop.f32.mrf.mxu0
        %v2182 = vadd.f32 %v2133, %v2181
        %2183 = vmatmul.bf16.gmra.mxu0 %v1411
        %v2184 = vpop.f32.mrf.mxu0
        %v2185 = vadd.f32 %v2136, %v2184
        %v2186 = vpop.f32.mrf.mxu0
        %v2187 = vadd.f32 %v2138, %v2186
        %2188 = vmatmul.bf16.gmra.mxu0 %v1413
        %v2189 = vpop.f32.mrf.mxu0
        %v2190 = vadd.f32 %v2141, %v2189
        %v2191 = vpop.f32.mrf.mxu0
        %v2192 = vadd.f32 %v2143, %v2191
        %2193 = vmatmul.bf16.gmra.mxu0 %v1415
        %v2194 = vpop.f32.mrf.mxu0
        %v2195 = vadd.f32 %v2146, %v2194
        %v2196 = vpop.f32.mrf.mxu0
        %v2197 = vadd.f32 %v2148, %v2196
        %2198 = vmatmul.bf16.gmra.mxu0 %v1417
        %v2199 = vpop.f32.mrf.mxu0
        %v2200 = vadd.f32 %v2151, %v2199
        %v2201 = vpop.f32.mrf.mxu0
        %v2202 = vadd.f32 %v2153, %v2201
        %2203 = vdwg.mxu0
        %2204 = vst [vmem:[%s297] sm:$0xff] %v1871
        %2205 = vst [vmem:[%s297 + $0x8] sm:$0xff] %v1969
        %2206 = vst [vmem:[%s297 + $0x10] sm:$0xff] %v2067
        %2207 = vst [vmem:[%s297 + $0x18] sm:$0xff] %v2165
        %2208 = vst [vmem:[%s297 + $0x20] sm:$0xff] %v1873
        %2209 = vst [vmem:[%s297 + $0x28] sm:$0xff] %v1971
        %2210 = vst [vmem:[%s297 + $0x30] sm:$0xff] %v2069
        %2211 = vst [vmem:[%s297 + $0x38] sm:$0xff] %v2167
        %2212 = vst [vmem:[%s297 + $0x40] sm:$0xff] %v1876
        %2213 = vst [vmem:[%s297 + $0x48] sm:$0xff] %v1974
        %2214 = vst [vmem:[%s297 + $0x50] sm:$0xff] %v2072
        %2215 = vst [vmem:[%s297 + $0x58] sm:$0xff] %v2170
        %2216 = vst [vmem:[%s297 + $0x60] sm:$0xff] %v1878
        %2217 = vst [vmem:[%s297 + $0x68] sm:$0xff] %v1976
        %2218 = vst [vmem:[%s297 + $0x70] sm:$0xff] %v2074
        %2219 = vst [vmem:[%s297 + $0x78] sm:$0xff] %v2172
        %2220 = vst [vmem:[%s297 + $0x80] sm:$0xff] %v1881
        %2221 = vst [vmem:[%s297 + $0x88] sm:$0xff] %v1979
        %2222 = vst [vmem:[%s297 + $0x90] sm:$0xff] %v2077
        %2223 = vst [vmem:[%s297 + $0x98] sm:$0xff] %v2175
        %2224 = vst [vmem:[%s297 + $0xa0] sm:$0xff] %v1883
        %2225 = vst [vmem:[%s297 + $0xa8] sm:$0xff] %v1981
        %2226 = vst [vmem:[%s297 + $0xb0] sm:$0xff] %v2079
        %2227 = vst [vmem:[%s297 + $0xb8] sm:$0xff] %v2177
        %2228 = vst [vmem:[%s297 + $0xc0] sm:$0xff] %v1886
        %2229 = vst [vmem:[%s297 + $0xc8] sm:$0xff] %v1984
        %2230 = vst [vmem:[%s297 + $0xd0] sm:$0xff] %v2082
        %2231 = vst [vmem:[%s297 + $0xd8] sm:$0xff] %v2180
        %2232 = vst [vmem:[%s297 + $0xe0] sm:$0xff] %v1888
        %2233 = vst [vmem:[%s297 + $0xe8] sm:$0xff] %v1986
        %2234 = vst [vmem:[%s297 + $0xf0] sm:$0xff] %v2084
        %2235 = vst [vmem:[%s297 + $0xf8] sm:$0xff] %v2182
        %2236 = vst [vmem:[%s297 + $0x100] sm:$0xff] %v1891
        %2237 = vst [vmem:[%s297 + $0x108] sm:$0xff] %v1989
        %2238 = vst [vmem:[%s297 + $0x110] sm:$0xff] %v2087
        %2239 = vst [vmem:[%s297 + $0x118] sm:$0xff] %v2185
        %2240 = vst [vmem:[%s297 + $0x120] sm:$0xff] %v1893
        %2241 = vst [vmem:[%s297 + $0x128] sm:$0xff] %v1991
        %2242 = vst [vmem:[%s297 + $0x130] sm:$0xff] %v2089
        %2243 = vst [vmem:[%s297 + $0x138] sm:$0xff] %v2187
        %2244 = vst [vmem:[%s297 + $0x140] sm:$0xff] %v1896
        %2245 = vst [vmem:[%s297 + $0x148] sm:$0xff] %v1994
        %2246 = vst [vmem:[%s297 + $0x150] sm:$0xff] %v2092
        %2247 = vst [vmem:[%s297 + $0x158] sm:$0xff] %v2190
        %2248 = vst [vmem:[%s297 + $0x160] sm:$0xff] %v1898
        %2249 = vst [vmem:[%s297 + $0x168] sm:$0xff] %v1996
        %2250 = vst [vmem:[%s297 + $0x170] sm:$0xff] %v2094
        %2251 = vst [vmem:[%s297 + $0x178] sm:$0xff] %v2192
        %2252 = vst [vmem:[%s297 + $0x180] sm:$0xff] %v1901
        %2253 = vst [vmem:[%s297 + $0x188] sm:$0xff] %v1999
        %2254 = vst [vmem:[%s297 + $0x190] sm:$0xff] %v2097
        %2255 = vst [vmem:[%s297 + $0x198] sm:$0xff] %v2195
        %2256 = vst [vmem:[%s297 + $0x1a0] sm:$0xff] %v1903
        %2257 = vst [vmem:[%s297 + $0x1a8] sm:$0xff] %v2001
        %2258 = vst [vmem:[%s297 + $0x1b0] sm:$0xff] %v2099
        %2259 = vst [vmem:[%s297 + $0x1b8] sm:$0xff] %v2197
        %2260 = vst [vmem:[%s297 + $0x1c0] sm:$0xff] %v1906
        %2261 = vst [vmem:[%s297 + $0x1c8] sm:$0xff] %v2004
        %2262 = vst [vmem:[%s297 + $0x1d0] sm:$0xff] %v2102
        %2263 = vst [vmem:[%s297 + $0x1d8] sm:$0xff] %v2200
        %2264 = vst [vmem:[%s297 + $0x1e0] sm:$0xff] %v1908
        %2265 = vst [vmem:[%s297 + $0x1e8] sm:$0xff] %v2006
        %2266 = vst [vmem:[%s297 + $0x1f0] sm:$0xff] %v2104
        %2267 = vst [vmem:[%s297 + $0x1f8] sm:$0xff] %v2202
        %v2268 = vlaneseq
        %v2269 = vshrl.u32 %v2268, 7
        %v2270 = vadd.s32 %v2269, 8
        %v2271 = vadd.s32 %v2269, 16
        %v2272 = vadd.s32 %v2269, 24
        %v2273 = vadd.s32 %v2269, 32
        %v2274 = vadd.s32 %v2269, 40
        %v2275 = vadd.s32 %v2269, 48
        %v2276 = vadd.s32 %v2269, 56
        %v2277 = vadd.s32 %v2269, 64
        %v2278 = vadd.s32 %v2269, 72
        %v2279 = vadd.s32 %v2269, 80
        %v2280 = vadd.s32 %v2269, 88
        %v2281 = vadd.s32 %v2269, 96
        %v2282 = vadd.s32 %v2269, 104
        %v2283 = vadd.s32 %v2269, 112
        %v2284 = vadd.s32 %v2269, 120
        %s2285 = smul.u32 %s26, 128
        %v2286 = vstv %s2285
        %v2287 = vadd.s32 %v2269, %v2286
        %v2288 = vadd.s32 %v2270, %v2286
        %v2289 = vadd.s32 %v2271, %v2286
        %v2290 = vadd.s32 %v2272, %v2286
        %v2291 = vadd.s32 %v2273, %v2286
        %v2292 = vadd.s32 %v2274, %v2286
        %v2293 = vadd.s32 %v2275, %v2286
        %v2294 = vadd.s32 %v2276, %v2286
        %v2295 = vadd.s32 %v2277, %v2286
        %v2296 = vadd.s32 %v2278, %v2286
        %v2297 = vadd.s32 %v2279, %v2286
        %v2298 = vadd.s32 %v2280, %v2286
        %v2299 = vadd.s32 %v2281, %v2286
        %v2300 = vadd.s32 %v2282, %v2286
        %v2301 = vadd.s32 %v2283, %v2286
        %v2302 = vadd.s32 %v2284, %v2286
        %vm2303 = vcmp.lt.s32.totalorder %v2287, 256
        %vm2304 = vcmp.lt.s32.totalorder %v2288, 256
        %vm2305 = vcmp.lt.s32.totalorder %v2289, 256
        %vm2306 = vcmp.lt.s32.totalorder %v2290, 256
        %vm2307 = vcmp.lt.s32.totalorder %v2291, 256
        %vm2308 = vcmp.lt.s32.totalorder %v2292, 256
        %vm2309 = vcmp.lt.s32.totalorder %v2293, 256
        %vm2310 = vcmp.lt.s32.totalorder %v2294, 256
        %vm2311 = vcmp.lt.s32.totalorder %v2295, 256
        %vm2312 = vcmp.lt.s32.totalorder %v2296, 256
        %vm2313 = vcmp.lt.s32.totalorder %v2297, 256
        %vm2314 = vcmp.lt.s32.totalorder %v2298, 256
        %vm2315 = vcmp.lt.s32.totalorder %v2299, 256
        %vm2316 = vcmp.lt.s32.totalorder %v2300, 256
        %vm2317 = vcmp.lt.s32.totalorder %v2301, 256
        %vm2318 = vcmp.lt.s32.totalorder %v2302, 256
        %v2319 = vsel %vm2303, 1, 0
        %v2320 = vsel %vm2304, 1, 0
        %v2321 = vsel %vm2305, 1, 0
        %v2322 = vsel %vm2306, 1, 0
        %v2323 = vsel %vm2307, 1, 0
        %v2324 = vsel %vm2308, 1, 0
        %v2325 = vsel %vm2309, 1, 0
        %v2326 = vsel %vm2310, 1, 0
        %v2327 = vsel %vm2311, 1, 0
        %v2328 = vsel %vm2312, 1, 0
        %v2329 = vsel %vm2313, 1, 0
        %v2330 = vsel %vm2314, 1, 0
        %v2331 = vsel %vm2315, 1, 0
        %v2332 = vsel %vm2316, 1, 0
        %v2333 = vsel %vm2317, 1, 0
        %v2334 = vsel %vm2318, 1, 0
        %v2335 = vcvt.s32.f32 %v2319
        %v2336 = vcvt.s32.f32 %v2320
        %v2337 = vcvt.s32.f32 %v2321
        %v2338 = vcvt.s32.f32 %v2322
        %v2339 = vcvt.s32.f32 %v2323
        %v2340 = vcvt.s32.f32 %v2324
        %v2341 = vcvt.s32.f32 %v2325
        %v2342 = vcvt.s32.f32 %v2326
        %v2343 = vcvt.s32.f32 %v2327
        %v2344 = vcvt.s32.f32 %v2328
        %v2345 = vcvt.s32.f32 %v2329
        %v2346 = vcvt.s32.f32 %v2330
        %v2347 = vcvt.s32.f32 %v2331
        %v2348 = vcvt.s32.f32 %v2332
        %v2349 = vcvt.s32.f32 %v2333
        %v2350 = vcvt.s32.f32 %v2334
        %v2351 = vmax.f32 %v1871, %v1969
        %v2352 = vmax.f32 %v2351, %v2067
        %v2353 = vmax.f32 %v2352, %v2165
        %2354 = vmax.xlane.f32.xlu0 %v2353
        %v2355 = vpop.xlane.xlu0 %2354
        %v2356 = vmax.f32 %v1873, %v1971
        %v2357 = vmax.f32 %v2356, %v2069
        %v2358 = vmax.f32 %v2357, %v2167
        %2359 = vmax.xlane.f32.xlu0 %v2358
        %v2360 = vpop.xlane.xlu0 %2359
        %v2361 = vmax.f32 %v1876, %v1974
        %v2362 = vmax.f32 %v2361, %v2072
        %v2363 = vmax.f32 %v2362, %v2170
        %2364 = vmax.xlane.f32.xlu0 %v2363
        %v2365 = vpop.xlane.xlu0 %2364
        %v2366 = vmax.f32 %v1878, %v1976
        %v2367 = vmax.f32 %v2366, %v2074
        %v2368 = vmax.f32 %v2367, %v2172
        %2369 = vmax.xlane.f32.xlu0 %v2368
        %v2370 = vpop.xlane.xlu0 %2369
        %v2371 = vmax.f32 %v1881, %v1979
        %v2372 = vmax.f32 %v2371, %v2077
        %v2373 = vmax.f32 %v2372, %v2175
        %2374 = vmax.xlane.f32.xlu0 %v2373
        %v2375 = vpop.xlane.xlu0 %2374
        %v2376 = vmax.f32 %v1883, %v1981
        %v2377 = vmax.f32 %v2376, %v2079
        %v2378 = vmax.f32 %v2377, %v2177
        %2379 = vmax.xlane.f32.xlu0 %v2378
        %v2380 = vpop.xlane.xlu0 %2379
        %v2381 = vmax.f32 %v1886, %v1984
        %v2382 = vmax.f32 %v2381, %v2082
        %v2383 = vmax.f32 %v2382, %v2180
        %2384 = vmax.xlane.f32.xlu0 %v2383
        %v2385 = vpop.xlane.xlu0 %2384
        %v2386 = vmax.f32 %v1888, %v1986
        %v2387 = vmax.f32 %v2386, %v2084
        %v2388 = vmax.f32 %v2387, %v2182
        %2389 = vmax.xlane.f32.xlu0 %v2388
        %v2390 = vpop.xlane.xlu0 %2389
        %v2391 = vmax.f32 %v1891, %v1989
        %v2392 = vmax.f32 %v2391, %v2087
        %v2393 = vmax.f32 %v2392, %v2185
        %2394 = vmax.xlane.f32.xlu0 %v2393
        %v2395 = vpop.xlane.xlu0 %2394
        %v2396 = vmax.f32 %v1893, %v1991
        %v2397 = vmax.f32 %v2396, %v2089
        %v2398 = vmax.f32 %v2397, %v2187
        %2399 = vmax.xlane.f32.xlu0 %v2398
        %v2400 = vpop.xlane.xlu0 %2399
        %v2401 = vmax.f32 %v1896, %v1994
        %v2402 = vmax.f32 %v2401, %v2092
        %v2403 = vmax.f32 %v2402, %v2190
        %2404 = vmax.xlane.f32.xlu0 %v2403
        %v2405 = vpop.xlane.xlu0 %2404
        %v2406 = vmax.f32 %v1898, %v1996
        %v2407 = vmax.f32 %v2406, %v2094
        %v2408 = vmax.f32 %v2407, %v2192
        %2409 = vmax.xlane.f32.xlu0 %v2408
        %v2410 = vpop.xlane.xlu0 %2409
        %v2411 = vmax.f32 %v1901, %v1999
        %v2412 = vmax.f32 %v2411, %v2097
        %v2413 = vmax.f32 %v2412, %v2195
        %2414 = vmax.xlane.f32.xlu0 %v2413
        %v2415 = vpop.xlane.xlu0 %2414
        %v2416 = vmax.f32 %v1903, %v2001
        %v2417 = vmax.f32 %v2416, %v2099
        %v2418 = vmax.f32 %v2417, %v2197
        %2419 = vmax.xlane.f32.xlu0 %v2418
        %v2420 = vpop.xlane.xlu0 %2419
        %v2421 = vmax.f32 %v1906, %v2004
        %v2422 = vmax.f32 %v2421, %v2102
        %v2423 = vmax.f32 %v2422, %v2200
        %2424 = vmax.xlane.f32.xlu0 %v2423
        %v2425 = vpop.xlane.xlu0 %2424
        %v2426 = vmax.f32 %v1908, %v2006
        %v2427 = vmax.f32 %v2426, %v2104
        %v2428 = vmax.f32 %v2427, %v2202
        %2429 = vmax.xlane.f32.xlu0 %v2428
        %v2430 = vpop.xlane.xlu0 %2429
        %v2431 = vsub.f32 %v1871, %v2355
        %v2432 = vsub.f32 %v1969, %v2355
        %v2433 = vsub.f32 %v2067, %v2355
        %v2434 = vsub.f32 %v2165, %v2355
        %v2435 = vsub.f32 %v1873, %v2360
        %v2436 = vsub.f32 %v1971, %v2360
        %v2437 = vsub.f32 %v2069, %v2360
        %v2438 = vsub.f32 %v2167, %v2360
        %v2439 = vsub.f32 %v1876, %v2365
        %v2440 = vsub.f32 %v1974, %v2365
        %v2441 = vsub.f32 %v2072, %v2365
        %v2442 = vsub.f32 %v2170, %v2365
        %v2443 = vsub.f32 %v1878, %v2370
        %v2444 = vsub.f32 %v1976, %v2370
        %v2445 = vsub.f32 %v2074, %v2370
        %v2446 = vsub.f32 %v2172, %v2370
        %v2447 = vsub.f32 %v1881, %v2375
        %v2448 = vsub.f32 %v1979, %v2375
        %v2449 = vsub.f32 %v2077, %v2375
        %v2450 = vsub.f32 %v2175, %v2375
        %v2451 = vsub.f32 %v1883, %v2380
        %v2452 = vsub.f32 %v1981, %v2380
        %v2453 = vsub.f32 %v2079, %v2380
        %v2454 = vsub.f32 %v2177, %v2380
        %v2455 = vsub.f32 %v1886, %v2385
        %v2456 = vsub.f32 %v1984, %v2385
        %v2457 = vsub.f32 %v2082, %v2385
        %v2458 = vsub.f32 %v2180, %v2385
        %v2459 = vsub.f32 %v1888, %v2390
        %v2460 = vsub.f32 %v1986, %v2390
        %v2461 = vsub.f32 %v2084, %v2390
        %v2462 = vsub.f32 %v2182, %v2390
        %v2463 = vsub.f32 %v1891, %v2395
        %v2464 = vsub.f32 %v1989, %v2395
        %v2465 = vsub.f32 %v2087, %v2395
        %v2466 = vsub.f32 %v2185, %v2395
        %v2467 = vsub.f32 %v1893, %v2400
        %v2468 = vsub.f32 %v1991, %v2400
        %v2469 = vsub.f32 %v2089, %v2400
        %v2470 = vsub.f32 %v2187, %v2400
        %v2471 = vsub.f32 %v1896, %v2405
        %v2472 = vsub.f32 %v1994, %v2405
        %v2473 = vsub.f32 %v2092, %v2405
        %v2474 = vsub.f32 %v2190, %v2405
        %v2475 = vsub.f32 %v1898, %v2410
        %v2476 = vsub.f32 %v1996, %v2410
        %v2477 = vsub.f32 %v2094, %v2410
        %v2478 = vsub.f32 %v2192, %v2410
        %v2479 = vsub.f32 %v1901, %v2415
        %v2480 = vsub.f32 %v1999, %v2415
        %v2481 = vsub.f32 %v2097, %v2415
        %v2482 = vsub.f32 %v2195, %v2415
        %v2483 = vsub.f32 %v1903, %v2420
        %v2484 = vsub.f32 %v2001, %v2420
        %v2485 = vsub.f32 %v2099, %v2420
        %v2486 = vsub.f32 %v2197, %v2420
        %v2487 = vsub.f32 %v1906, %v2425
        %v2488 = vsub.f32 %v2004, %v2425
        %v2489 = vsub.f32 %v2102, %v2425
        %v2490 = vsub.f32 %v2200, %v2425
        %v2491 = vsub.f32 %v1908, %v2430
        %v2492 = vsub.f32 %v2006, %v2430
        %v2493 = vsub.f32 %v2104, %v2430
        %v2494 = vsub.f32 %v2202, %v2430
        %v2495 = vmul.f32 %v2431, 1.442695
        %v2496 = vpow.pop %v2495
        %v2497 = vmul.f32 %v2432, 1.442695
        %v2498 = vpow.pop %v2497
        %v2499 = vmul.f32 %v2433, 1.442695
        %v2500 = vpow.pop %v2499
        %v2501 = vmul.f32 %v2434, 1.442695
        %v2502 = vpow.pop %v2501
        %v2503 = vmul.f32 %v2435, 1.442695
        %v2504 = vpow.pop %v2503
        %v2505 = vmul.f32 %v2436, 1.442695
        %v2506 = vpow.pop %v2505
        %v2507 = vmul.f32 %v2437, 1.442695
        %v2508 = vpow.pop %v2507
        %v2509 = vmul.f32 %v2438, 1.442695
        %v2510 = vpow.pop %v2509
        %v2511 = vmul.f32 %v2439, 1.442695
        %v2512 = vpow.pop %v2511
        %v2513 = vmul.f32 %v2440, 1.442695
        %v2514 = vpow.pop %v2513
        %v2515 = vmul.f32 %v2441, 1.442695
        %v2516 = vpow.pop %v2515
        %v2517 = vmul.f32 %v2442, 1.442695
        %v2518 = vpow.pop %v2517
        %v2519 = vmul.f32 %v2443, 1.442695
        %v2520 = vpow.pop %v2519
        %v2521 = vmul.f32 %v2444, 1.442695
        %v2522 = vpow.pop %v2521
        %v2523 = vmul.f32 %v2445, 1.442695
        %v2524 = vpow.pop %v2523
        %v2525 = vmul.f32 %v2446, 1.442695
        %v2526 = vpow.pop %v2525
        %v2527 = vmul.f32 %v2447, 1.442695
        %v2528 = vpow.pop %v2527
        %v2529 = vmul.f32 %v2448, 1.442695
        %v2530 = vpow.pop %v2529
        %v2531 = vmul.f32 %v2449, 1.442695
        %v2532 = vpow.pop %v2531
        %v2533 = vmul.f32 %v2450, 1.442695
        %v2534 = vpow.pop %v2533
        %v2535 = vmul.f32 %v2451, 1.442695
        %v2536 = vpow.pop %v2535
        %v2537 = vmul.f32 %v2452, 1.442695
        %v2538 = vpow.pop %v2537
        %v2539 = vmul.f32 %v2453, 1.442695
        %v2540 = vpow.pop %v2539
        %v2541 = vmul.f32 %v2454, 1.442695
        %v2542 = vpow.pop %v2541
        %v2543 = vmul.f32 %v2455, 1.442695
        %v2544 = vpow.pop %v2543
        %v2545 = vmul.f32 %v2456, 1.442695
        %v2546 = vpow.pop %v2545
        %v2547 = vmul.f32 %v2457, 1.442695
        %v2548 = vpow.pop %v2547
        %v2549 = vmul.f32 %v2458, 1.442695
        %v2550 = vpow.pop %v2549
        %v2551 = vmul.f32 %v2459, 1.442695
        %v2552 = vpow.pop %v2551
        %v2553 = vmul.f32 %v2460, 1.442695
        %v2554 = vpow.pop %v2553
        %v2555 = vmul.f32 %v2461, 1.442695
        %v2556 = vpow.pop %v2555
        %v2557 = vmul.f32 %v2462, 1.442695
        %v2558 = vpow.pop %v2557
        %v2559 = vmul.f32 %v2463, 1.442695
        %v2560 = vpow.pop %v2559
        %v2561 = vmul.f32 %v2464, 1.442695
        %v2562 = vpow.pop %v2561
        %v2563 = vmul.f32 %v2465, 1.442695
        %v2564 = vpow.pop %v2563
        %v2565 = vmul.f32 %v2466, 1.442695
        %v2566 = vpow.pop %v2565
        %v2567 = vmul.f32 %v2467, 1.442695
        %v2568 = vpow.pop %v2567
        %v2569 = vmul.f32 %v2468, 1.442695
        %v2570 = vpow.pop %v2569
        %v2571 = vmul.f32 %v2469, 1.442695
        %v2572 = vpow.pop %v2571
        %v2573 = vmul.f32 %v2470, 1.442695
        %v2574 = vpow.pop %v2573
        %v2575 = vmul.f32 %v2471, 1.442695
        %v2576 = vpow.pop %v2575
        %v2577 = vmul.f32 %v2472, 1.442695
        %v2578 = vpow.pop %v2577
        %v2579 = vmul.f32 %v2473, 1.442695
        %v2580 = vpow.pop %v2579
        %v2581 = vmul.f32 %v2474, 1.442695
        %v2582 = vpow.pop %v2581
        %v2583 = vmul.f32 %v2475, 1.442695
        %v2584 = vpow.pop %v2583
        %v2585 = vmul.f32 %v2476, 1.442695
        %v2586 = vpow.pop %v2585
        %v2587 = vmul.f32 %v2477, 1.442695
        %v2588 = vpow.pop %v2587
        %v2589 = vmul.f32 %v2478, 1.442695
        %v2590 = vpow.pop %v2589
        %v2591 = vmul.f32 %v2479, 1.442695
        %v2592 = vpow.pop %v2591
        %v2593 = vmul.f32 %v2480, 1.442695
        %v2594 = vpow.pop %v2593
        %v2595 = vmul.f32 %v2481, 1.442695
        %v2596 = vpow.pop %v2595
        %v2597 = vmul.f32 %v2482, 1.442695
        %v2598 = vpow.pop %v2597
        %v2599 = vmul.f32 %v2483, 1.442695
        %v2600 = vpow.pop %v2599
        %v2601 = vmul.f32 %v2484, 1.442695
        %v2602 = vpow.pop %v2601
        %v2603 = vmul.f32 %v2485, 1.442695
        %v2604 = vpow.pop %v2603
        %v2605 = vmul.f32 %v2486, 1.442695
        %v2606 = vpow.pop %v2605
        %v2607 = vmul.f32 %v2487, 1.442695
        %v2608 = vpow.pop %v2607
        %v2609 = vmul.f32 %v2488, 1.442695
        %v2610 = vpow.pop %v2609
        %v2611 = vmul.f32 %v2489, 1.442695
        %v2612 = vpow.pop %v2611
        %v2613 = vmul.f32 %v2490, 1.442695
        %v2614 = vpow.pop %v2613
        %v2615 = vmul.f32 %v2491, 1.442695
        %v2616 = vpow.pop %v2615
        %v2617 = vmul.f32 %v2492, 1.442695
        %v2618 = vpow.pop %v2617
        %v2619 = vmul.f32 %v2493, 1.442695
        %v2620 = vpow.pop %v2619
        %v2621 = vmul.f32 %v2494, 1.442695
        %v2622 = vpow.pop %v2621
        %v2623 = vadd.f32 %v2496, %v2498
        %v2624 = vadd.f32 %v2623, %v2500
        %v2625 = vadd.f32 %v2624, %v2502
        %2626 = vadd.xlane.f32.xlu0 %v2625
        %v2627 = vpop.xlane.xlu0 %2626
        %v2628 = vadd.f32 %v2504, %v2506
        %v2629 = vadd.f32 %v2628, %v2508
        %v2630 = vadd.f32 %v2629, %v2510
        %2631 = vadd.xlane.f32.xlu0 %v2630
        %v2632 = vpop.xlane.xlu0 %2631
        %v2633 = vadd.f32 %v2512, %v2514
        %v2634 = vadd.f32 %v2633, %v2516
        %v2635 = vadd.f32 %v2634, %v2518
        %2636 = vadd.xlane.f32.xlu0 %v2635
        %v2637 = vpop.xlane.xlu0 %2636
        %v2638 = vadd.f32 %v2520, %v2522
        %v2639 = vadd.f32 %v2638, %v2524
        %v2640 = vadd.f32 %v2639, %v2526
        %2641 = vadd.xlane.f32.xlu0 %v2640
        %v2642 = vpop.xlane.xlu0 %2641
        %v2643 = vadd.f32 %v2528, %v2530
        %v2644 = vadd.f32 %v2643, %v2532
        %v2645 = vadd.f32 %v2644, %v2534
        %2646 = vadd.xlane.f32.xlu0 %v2645
        %v2647 = vpop.xlane.xlu0 %2646
        %v2648 = vadd.f32 %v2536, %v2538
        %v2649 = vadd.f32 %v2648, %v2540
        %v2650 = vadd.f32 %v2649, %v2542
        %2651 = vadd.xlane.f32.xlu0 %v2650
        %v2652 = vpop.xlane.xlu0 %2651
        %v2653 = vadd.f32 %v2544, %v2546
        %v2654 = vadd.f32 %v2653, %v2548
        %v2655 = vadd.f32 %v2654, %v2550
        %2656 = vadd.xlane.f32.xlu0 %v2655
        %v2657 = vpop.xlane.xlu0 %2656
        %v2658 = vadd.f32 %v2552, %v2554
        %v2659 = vadd.f32 %v2658, %v2556
        %v2660 = vadd.f32 %v2659, %v2558
        %2661 = vadd.xlane.f32.xlu0 %v2660
        %v2662 = vpop.xlane.xlu0 %2661
        %v2663 = vadd.f32 %v2560, %v2562
        %v2664 = vadd.f32 %v2663, %v2564
        %v2665 = vadd.f32 %v2664, %v2566
        %2666 = vadd.xlane.f32.xlu0 %v2665
        %v2667 = vpop.xlane.xlu0 %2666
        %v2668 = vadd.f32 %v2568, %v2570
        %v2669 = vadd.f32 %v2668, %v2572
        %v2670 = vadd.f32 %v2669, %v2574
        %2671 = vadd.xlane.f32.xlu0 %v2670
        %v2672 = vpop.xlane.xlu0 %2671
        %v2673 = vadd.f32 %v2576, %v2578
        %v2674 = vadd.f32 %v2673, %v2580
        %v2675 = vadd.f32 %v2674, %v2582
        %2676 = vadd.xlane.f32.xlu0 %v2675
        %v2677 = vpop.xlane.xlu0 %2676
        %v2678 = vadd.f32 %v2584, %v2586
        %v2679 = vadd.f32 %v2678, %v2588
        %v2680 = vadd.f32 %v2679, %v2590
        %2681 = vadd.xlane.f32.xlu0 %v2680
        %v2682 = vpop.xlane.xlu0 %2681
        %v2683 = vadd.f32 %v2592, %v2594
        %v2684 = vadd.f32 %v2683, %v2596
        %v2685 = vadd.f32 %v2684, %v2598
        %2686 = vadd.xlane.f32.xlu0 %v2685
        %v2687 = vpop.xlane.xlu0 %2686
        %v2688 = vadd.f32 %v2600, %v2602
        %v2689 = vadd.f32 %v2688, %v2604
        %v2690 = vadd.f32 %v2689, %v2606
        %2691 = vadd.xlane.f32.xlu0 %v2690
        %v2692 = vpop.xlane.xlu0 %2691
        %v2693 = vadd.f32 %v2608, %v2610
        %v2694 = vadd.f32 %v2693, %v2612
        %v2695 = vadd.f32 %v2694, %v2614
        %2696 = vadd.xlane.f32.xlu0 %v2695
        %v2697 = vpop.xlane.xlu0 %2696
        %v2698 = vadd.f32 %v2616, %v2618
        %v2699 = vadd.f32 %v2698, %v2620
        %v2700 = vadd.f32 %v2699, %v2622
        %2701 = vadd.xlane.f32.xlu0 %v2700
        %v2702 = vpop.xlane.xlu0 %2701
        %v2703 = vlog2.pop %v2627
        %v2704 = vmul.f32 %v2703, 0.6931472
        %v2705 = vlog2.pop %v2632
        %v2706 = vmul.f32 %v2705, 0.6931472
        %v2707 = vlog2.pop %v2637
        %v2708 = vmul.f32 %v2707, 0.6931472
        %v2709 = vlog2.pop %v2642
        %v2710 = vmul.f32 %v2709, 0.6931472
        %v2711 = vlog2.pop %v2647
        %v2712 = vmul.f32 %v2711, 0.6931472
        %v2713 = vlog2.pop %v2652
        %v2714 = vmul.f32 %v2713, 0.6931472
        %v2715 = vlog2.pop %v2657
        %v2716 = vmul.f32 %v2715, 0.6931472
        %v2717 = vlog2.pop %v2662
        %v2718 = vmul.f32 %v2717, 0.6931472
        %v2719 = vlog2.pop %v2667
        %v2720 = vmul.f32 %v2719, 0.6931472
        %v2721 = vlog2.pop %v2672
        %v2722 = vmul.f32 %v2721, 0.6931472
        %v2723 = vlog2.pop %v2677
        %v2724 = vmul.f32 %v2723, 0.6931472
        %v2725 = vlog2.pop %v2682
        %v2726 = vmul.f32 %v2725, 0.6931472
        %v2727 = vlog2.pop %v2687
        %v2728 = vmul.f32 %v2727, 0.6931472
        %v2729 = vlog2.pop %v2692
        %v2730 = vmul.f32 %v2729, 0.6931472
        %v2731 = vlog2.pop %v2697
        %v2732 = vmul.f32 %v2731, 0.6931472
        %v2733 = vlog2.pop %v2702
        %v2734 = vmul.f32 %v2733, 0.6931472
        %v2735 = vadd.f32 %v2355, %v2704
        %v2736 = vadd.f32 %v2360, %v2706
        %v2737 = vadd.f32 %v2365, %v2708
        %v2738 = vadd.f32 %v2370, %v2710
        %v2739 = vadd.f32 %v2375, %v2712
        %v2740 = vadd.f32 %v2380, %v2714
        %v2741 = vadd.f32 %v2385, %v2716
        %v2742 = vadd.f32 %v2390, %v2718
        %v2743 = vadd.f32 %v2395, %v2720
        %v2744 = vadd.f32 %v2400, %v2722
        %v2745 = vadd.f32 %v2405, %v2724
        %v2746 = vadd.f32 %v2410, %v2726
        %v2747 = vadd.f32 %v2415, %v2728
        %v2748 = vadd.f32 %v2420, %v2730
        %v2749 = vadd.f32 %v2425, %v2732
        %v2750 = vadd.f32 %v2430, %v2734
        %2751 = vset.pattern.permute.xlu0 0
        %2752 = vperm.xlu0 %2751, %v333
        %v2753 = vpop.permute.xlu0 %2752
        %2754 = vset.pattern.permute.xlu0 0
        %2755 = vperm.xlu0 %2754, %v334
        %v2756 = vpop.permute.xlu0 %2755
        %2757 = vset.pattern.permute.xlu0 0
        %2758 = vperm.xlu0 %2757, %v335
        %v2759 = vpop.permute.xlu0 %2758
        %2760 = vset.pattern.permute.xlu0 0
        %2761 = vperm.xlu0 %2760, %v336
        %v2762 = vpop.permute.xlu0 %2761
        %2763 = vset.pattern.permute.xlu0 0
        %2764 = vperm.xlu0 %2763, %v337
        %v2765 = vpop.permute.xlu0 %2764
        %2766 = vset.pattern.permute.xlu0 0
        %2767 = vperm.xlu0 %2766, %v338
        %v2768 = vpop.permute.xlu0 %2767
        %2769 = vset.pattern.permute.xlu0 0
        %2770 = vperm.xlu0 %2769, %v339
        %v2771 = vpop.permute.xlu0 %2770
        %2772 = vset.pattern.permute.xlu0 0
        %2773 = vperm.xlu0 %2772, %v340
        %v2774 = vpop.permute.xlu0 %2773
        %2775 = vset.pattern.permute.xlu0 0
        %2776 = vperm.xlu0 %2775, %v341
        %v2777 = vpop.permute.xlu0 %2776
        %2778 = vset.pattern.permute.xlu0 0
        %2779 = vperm.xlu0 %2778, %v342
        %v2780 = vpop.permute.xlu0 %2779
        %2781 = vset.pattern.permute.xlu0 0
        %2782 = vperm.xlu0 %2781, %v343
        %v2783 = vpop.permute.xlu0 %2782
        %2784 = vset.pattern.permute.xlu0 0
        %2785 = vperm.xlu0 %2784, %v344
        %v2786 = vpop.permute.xlu0 %2785
        %2787 = vset.pattern.permute.xlu0 0
        %2788 = vperm.xlu0 %2787, %v345
        %v2789 = vpop.permute.xlu0 %2788
        %2790 = vset.pattern.permute.xlu0 0
        %2791 = vperm.xlu0 %2790, %v346
        %v2792 = vpop.permute.xlu0 %2791
        %2793 = vset.pattern.permute.xlu0 0
        %2794 = vperm.xlu0 %2793, %v347
        %v2795 = vpop.permute.xlu0 %2794
        %2796 = vset.pattern.permute.xlu0 0
        %2797 = vperm.xlu0 %2796, %v348
        %v2798 = vpop.permute.xlu0 %2797
        %vm2799 = vcmp.eq.s32.totalorder %v350, %v2753
        %vm2800 = vcmp.eq.s32.totalorder %v351, %v2753
        %vm2801 = vcmp.eq.s32.totalorder %v352, %v2753
        %vm2802 = vcmp.eq.s32.totalorder %v353, %v2753
        %vm2803 = vcmp.eq.s32.totalorder %v350, %v2756
        %vm2804 = vcmp.eq.s32.totalorder %v351, %v2756
        %vm2805 = vcmp.eq.s32.totalorder %v352, %v2756
        %vm2806 = vcmp.eq.s32.totalorder %v353, %v2756
        %vm2807 = vcmp.eq.s32.totalorder %v350, %v2759
        %vm2808 = vcmp.eq.s32.totalorder %v351, %v2759
        %vm2809 = vcmp.eq.s32.totalorder %v352, %v2759
        %vm2810 = vcmp.eq.s32.totalorder %v353, %v2759
        %vm2811 = vcmp.eq.s32.totalorder %v350, %v2762
        %vm2812 = vcmp.eq.s32.totalorder %v351, %v2762
        %vm2813 = vcmp.eq.s32.totalorder %v352, %v2762
        %vm2814 = vcmp.eq.s32.totalorder %v353, %v2762
        %vm2815 = vcmp.eq.s32.totalorder %v350, %v2765
        %vm2816 = vcmp.eq.s32.totalorder %v351, %v2765
        %vm2817 = vcmp.eq.s32.totalorder %v352, %v2765
        %vm2818 = vcmp.eq.s32.totalorder %v353, %v2765
        %vm2819 = vcmp.eq.s32.totalorder %v350, %v2768
        %vm2820 = vcmp.eq.s32.totalorder %v351, %v2768
        %vm2821 = vcmp.eq.s32.totalorder %v352, %v2768
        %vm2822 = vcmp.eq.s32.totalorder %v353, %v2768
        %vm2823 = vcmp.eq.s32.totalorder %v350, %v2771
        %vm2824 = vcmp.eq.s32.totalorder %v351, %v2771
        %vm2825 = vcmp.eq.s32.totalorder %v352, %v2771
        %vm2826 = vcmp.eq.s32.totalorder %v353, %v2771
        %vm2827 = vcmp.eq.s32.totalorder %v350, %v2774
        %vm2828 = vcmp.eq.s32.totalorder %v351, %v2774
        %vm2829 = vcmp.eq.s32.totalorder %v352, %v2774
        %vm2830 = vcmp.eq.s32.totalorder %v353, %v2774
        %vm2831 = vcmp.eq.s32.totalorder %v350, %v2777
        %vm2832 = vcmp.eq.s32.totalorder %v351, %v2777
        %vm2833 = vcmp.eq.s32.totalorder %v352, %v2777
        %vm2834 = vcmp.eq.s32.totalorder %v353, %v2777
        %vm2835 = vcmp.eq.s32.totalorder %v350, %v2780
        %vm2836 = vcmp.eq.s32.totalorder %v351, %v2780
        %vm2837 = vcmp.eq.s32.totalorder %v352, %v2780
        %vm2838 = vcmp.eq.s32.totalorder %v353, %v2780
        %vm2839 = vcmp.eq.s32.totalorder %v350, %v2783
        %vm2840 = vcmp.eq.s32.totalorder %v351, %v2783
        %vm2841 = vcmp.eq.s32.totalorder %v352, %v2783
        %vm2842 = vcmp.eq.s32.totalorder %v353, %v2783
        %vm2843 = vcmp.eq.s32.totalorder %v350, %v2786
        %vm2844 = vcmp.eq.s32.totalorder %v351, %v2786
        %vm2845 = vcmp.eq.s32.totalorder %v352, %v2786
        %vm2846 = vcmp.eq.s32.totalorder %v353, %v2786
        %vm2847 = vcmp.eq.s32.totalorder %v350, %v2789
        %vm2848 = vcmp.eq.s32.totalorder %v351, %v2789
        %vm2849 = vcmp.eq.s32.totalorder %v352, %v2789
        %vm2850 = vcmp.eq.s32.totalorder %v353, %v2789
        %vm2851 = vcmp.eq.s32.totalorder %v350, %v2792
        %vm2852 = vcmp.eq.s32.totalorder %v351, %v2792
        %vm2853 = vcmp.eq.s32.totalorder %v352, %v2792
        %vm2854 = vcmp.eq.s32.totalorder %v353, %v2792
        %vm2855 = vcmp.eq.s32.totalorder %v350, %v2795
        %vm2856 = vcmp.eq.s32.totalorder %v351, %v2795
        %vm2857 = vcmp.eq.s32.totalorder %v352, %v2795
        %vm2858 = vcmp.eq.s32.totalorder %v353, %v2795
        %vm2859 = vcmp.eq.s32.totalorder %v350, %v2798
        %vm2860 = vcmp.eq.s32.totalorder %v351, %v2798
        %vm2861 = vcmp.eq.s32.totalorder %v352, %v2798
        %vm2862 = vcmp.eq.s32.totalorder %v353, %v2798
        %v2863 = vsel %vm2799, %v1871, 0.0
        %v2864 = vsel %vm2800, %v1969, 0.0
        %v2865 = vsel %vm2801, %v2067, 0.0
        %v2866 = vsel %vm2802, %v2165, 0.0
        %v2867 = vsel %vm2803, %v1873, 0.0
        %v2868 = vsel %vm2804, %v1971, 0.0
        %v2869 = vsel %vm2805, %v2069, 0.0
        %v2870 = vsel %vm2806, %v2167, 0.0
        %v2871 = vsel %vm2807, %v1876, 0.0
        %v2872 = vsel %vm2808, %v1974, 0.0
        %v2873 = vsel %vm2809, %v2072, 0.0
        %v2874 = vsel %vm2810, %v2170, 0.0
        %v2875 = vsel %vm2811, %v1878, 0.0
        %v2876 = vsel %vm2812, %v1976, 0.0
        %v2877 = vsel %vm2813, %v2074, 0.0
        %v2878 = vsel %vm2814, %v2172, 0.0
        %v2879 = vsel %vm2815, %v1881, 0.0
        %v2880 = vsel %vm2816, %v1979, 0.0
        %v2881 = vsel %vm2817, %v2077, 0.0
        %v2882 = vsel %vm2818, %v2175, 0.0
        %v2883 = vsel %vm2819, %v1883, 0.0
        %v2884 = vsel %vm2820, %v1981, 0.0
        %v2885 = vsel %vm2821, %v2079, 0.0
        %v2886 = vsel %vm2822, %v2177, 0.0
        %v2887 = vsel %vm2823, %v1886, 0.0
        %v2888 = vsel %vm2824, %v1984, 0.0
        %v2889 = vsel %vm2825, %v2082, 0.0
        %v2890 = vsel %vm2826, %v2180, 0.0
        %v2891 = vsel %vm2827, %v1888, 0.0
        %v2892 = vsel %vm2828, %v1986, 0.0
        %v2893 = vsel %vm2829, %v2084, 0.0
        %v2894 = vsel %vm2830, %v2182, 0.0
        %v2895 = vsel %vm2831, %v1891, 0.0
        %v2896 = vsel %vm2832, %v1989, 0.0
        %v2897 = vsel %vm2833, %v2087, 0.0
        %v2898 = vsel %vm2834, %v2185, 0.0
        %v2899 = vsel %vm2835, %v1893, 0.0
        %v2900 = vsel %vm2836, %v1991, 0.0
        %v2901 = vsel %vm2837, %v2089, 0.0
        %v2902 = vsel %vm2838, %v2187, 0.0
        %v2903 = vsel %vm2839, %v1896, 0.0
        %v2904 = vsel %vm2840, %v1994, 0.0
        %v2905 = vsel %vm2841, %v2092, 0.0
        %v2906 = vsel %vm2842, %v2190, 0.0
        %v2907 = vsel %vm2843, %v1898, 0.0
        %v2908 = vsel %vm2844, %v1996, 0.0
        %v2909 = vsel %vm2845, %v2094, 0.0
        %v2910 = vsel %vm2846, %v2192, 0.0
        %v2911 = vsel %vm2847, %v1901, 0.0
        %v2912 = vsel %vm2848, %v1999, 0.0
        %v2913 = vsel %vm2849, %v2097, 0.0
        %v2914 = vsel %vm2850, %v2195, 0.0
        %v2915 = vsel %vm2851, %v1903, 0.0
        %v2916 = vsel %vm2852, %v2001, 0.0
        %v2917 = vsel %vm2853, %v2099, 0.0
        %v2918 = vsel %vm2854, %v2197, 0.0
        %v2919 = vsel %vm2855, %v1906, 0.0
        %v2920 = vsel %vm2856, %v2004, 0.0
        %v2921 = vsel %vm2857, %v2102, 0.0
        %v2922 = vsel %vm2858, %v2200, 0.0
        %v2923 = vsel %vm2859, %v1908, 0.0
        %v2924 = vsel %vm2860, %v2006, 0.0
        %v2925 = vsel %vm2861, %v2104, 0.0
        %v2926 = vsel %vm2862, %v2202, 0.0
        %v2927 = vadd.f32 %v2863, %v2864
        %v2928 = vadd.f32 %v2927, %v2865
        %v2929 = vadd.f32 %v2928, %v2866
        %2930 = vadd.xlane.f32.xlu0 %v2929
        %v2931 = vpop.xlane.xlu0 %2930
        %v2932 = vadd.f32 %v2867, %v2868
        %v2933 = vadd.f32 %v2932, %v2869
        %v2934 = vadd.f32 %v2933, %v2870
        %2935 = vadd.xlane.f32.xlu0 %v2934
        %v2936 = vpop.xlane.xlu0 %2935
        %v2937 = vadd.f32 %v2871, %v2872
        %v2938 = vadd.f32 %v2937, %v2873
        %v2939 = vadd.f32 %v2938, %v2874
        %2940 = vadd.xlane.f32.xlu0 %v2939
        %v2941 = vpop.xlane.xlu0 %2940
        %v2942 = vadd.f32 %v2875, %v2876
        %v2943 = vadd.f32 %v2942, %v2877
        %v2944 = vadd.f32 %v2943, %v2878
        %2945 = vadd.xlane.f32.xlu0 %v2944
        %v2946 = vpop.xlane.xlu0 %2945
        %v2947 = vadd.f32 %v2879, %v2880
        %v2948 = vadd.f32 %v2947, %v2881
        %v2949 = vadd.f32 %v2948, %v2882
        %2950 = vadd.xlane.f32.xlu0 %v2949
        %v2951 = vpop.xlane.xlu0 %2950
        %v2952 = vadd.f32 %v2883, %v2884
        %v2953 = vadd.f32 %v2952, %v2885
        %v2954 = vadd.f32 %v2953, %v2886
        %2955 = vadd.xlane.f32.xlu0 %v2954
        %v2956 = vpop.xlane.xlu0 %2955
        %v2957 = vadd.f32 %v2887, %v2888
        %v2958 = vadd.f32 %v2957, %v2889
        %v2959 = vadd.f32 %v2958, %v2890
        %2960 = vadd.xlane.f32.xlu0 %v2959
        %v2961 = vpop.xlane.xlu0 %2960
        %v2962 = vadd.f32 %v2891, %v2892
        %v2963 = vadd.f32 %v2962, %v2893
        %v2964 = vadd.f32 %v2963, %v2894
        %2965 = vadd.xlane.f32.xlu0 %v2964
        %v2966 = vpop.xlane.xlu0 %2965
        %v2967 = vadd.f32 %v2895, %v2896
        %v2968 = vadd.f32 %v2967, %v2897
        %v2969 = vadd.f32 %v2968, %v2898
        %2970 = vadd.xlane.f32.xlu0 %v2969
        %v2971 = vpop.xlane.xlu0 %2970
        %v2972 = vadd.f32 %v2899, %v2900
        %v2973 = vadd.f32 %v2972, %v2901
        %v2974 = vadd.f32 %v2973, %v2902
        %2975 = vadd.xlane.f32.xlu0 %v2974
        %v2976 = vpop.xlane.xlu0 %2975
        %v2977 = vadd.f32 %v2903, %v2904
        %v2978 = vadd.f32 %v2977, %v2905
        %v2979 = vadd.f32 %v2978, %v2906
        %2980 = vadd.xlane.f32.xlu0 %v2979
        %v2981 = vpop.xlane.xlu0 %2980
        %v2982 = vadd.f32 %v2907, %v2908
        %v2983 = vadd.f32 %v2982, %v2909
        %v2984 = vadd.f32 %v2983, %v2910
        %2985 = vadd.xlane.f32.xlu0 %v2984
        %v2986 = vpop.xlane.xlu0 %2985
        %v2987 = vadd.f32 %v2911, %v2912
        %v2988 = vadd.f32 %v2987, %v2913
        %v2989 = vadd.f32 %v2988, %v2914
        %2990 = vadd.xlane.f32.xlu0 %v2989
        %v2991 = vpop.xlane.xlu0 %2990
        %v2992 = vadd.f32 %v2915, %v2916
        %v2993 = vadd.f32 %v2992, %v2917
        %v2994 = vadd.f32 %v2993, %v2918
        %2995 = vadd.xlane.f32.xlu0 %v2994
        %v2996 = vpop.xlane.xlu0 %2995
        %v2997 = vadd.f32 %v2919, %v2920
        %v2998 = vadd.f32 %v2997, %v2921
        %v2999 = vadd.f32 %v2998, %v2922
        %3000 = vadd.xlane.f32.xlu0 %v2999
        %v3001 = vpop.xlane.xlu0 %3000
        %v3002 = vadd.f32 %v2923, %v2924
        %v3003 = vadd.f32 %v3002, %v2925
        %v3004 = vadd.f32 %v3003, %v2926
        %3005 = vadd.xlane.f32.xlu0 %v3004
        %v3006 = vpop.xlane.xlu0 %3005
        %v3007 = vsub.f32 %v2735, %v2931
        %v3008 = vsub.f32 %v2736, %v2936
        %v3009 = vsub.f32 %v2737, %v2941
        %v3010 = vsub.f32 %v2738, %v2946
        %v3011 = vsub.f32 %v2739, %v2951
        %v3012 = vsub.f32 %v2740, %v2956
        %v3013 = vsub.f32 %v2741, %v2961
        %v3014 = vsub.f32 %v2742, %v2966
        %v3015 = vsub.f32 %v2743, %v2971
        %v3016 = vsub.f32 %v2744, %v2976
        %v3017 = vsub.f32 %v2745, %v2981
        %v3018 = vsub.f32 %v2746, %v2986
        %v3019 = vsub.f32 %v2747, %v2991
        %v3020 = vsub.f32 %v2748, %v2996
        %v3021 = vsub.f32 %v2749, %v3001
        %v3022 = vsub.f32 %v2750, %v3006
        %v3023 = vmul.f32 %v3007, %v2335
        %v3024 = vmul.f32 %v3008, %v2336
        %v3025 = vmul.f32 %v3009, %v2337
        %v3026 = vmul.f32 %v3010, %v2338
        %v3027 = vmul.f32 %v3011, %v2339
        %v3028 = vmul.f32 %v3012, %v2340
        %v3029 = vmul.f32 %v3013, %v2341
        %v3030 = vmul.f32 %v3014, %v2342
        %v3031 = vmul.f32 %v3015, %v2343
        %v3032 = vmul.f32 %v3016, %v2344
        %v3033 = vmul.f32 %v3017, %v2345
        %v3034 = vmul.f32 %v3018, %v2346
        %v3035 = vmul.f32 %v3019, %v2347
        %v3036 = vmul.f32 %v3020, %v2348
        %v3037 = vmul.f32 %v3021, %v2349
        %v3038 = vmul.f32 %v3022, %v2350
        %vm3039 = vcmask 7168
        %v3040 = vsel %vm3039, %v3023, 0.0
        %v3041 = vsel %vm3039, %v3024, 0.0
        %v3042 = vadd.f32 %v3040, %v3041
        %v3043 = vsel %vm3039, %v3025, 0.0
        %v3044 = vadd.f32 %v3042, %v3043
        %v3045 = vsel %vm3039, %v3026, 0.0
        %v3046 = vadd.f32 %v3044, %v3045
        %v3047 = vsel %vm3039, %v3027, 0.0
        %v3048 = vadd.f32 %v3046, %v3047
        %v3049 = vsel %vm3039, %v3028, 0.0
        %v3050 = vadd.f32 %v3048, %v3049
        %v3051 = vsel %vm3039, %v3029, 0.0
        %v3052 = vadd.f32 %v3050, %v3051
        %v3053 = vsel %vm3039, %v3030, 0.0
        %v3054 = vadd.f32 %v3052, %v3053
        %v3055 = vsel %vm3039, %v3031, 0.0
        %v3056 = vadd.f32 %v3054, %v3055
        %v3057 = vsel %vm3039, %v3032, 0.0
        %v3058 = vadd.f32 %v3056, %v3057
        %v3059 = vsel %vm3039, %v3033, 0.0
        %v3060 = vadd.f32 %v3058, %v3059
        %v3061 = vsel %vm3039, %v3034, 0.0
        %v3062 = vadd.f32 %v3060, %v3061
        %v3063 = vsel %vm3039, %v3035, 0.0
        %v3064 = vadd.f32 %v3062, %v3063
        %v3065 = vsel %vm3039, %v3036, 0.0
        %v3066 = vadd.f32 %v3064, %v3065
        %v3067 = vsel %vm3039, %v3037, 0.0
        %v3068 = vadd.f32 %v3066, %v3067
        %v3069 = vsel %vm3039, %v3038, 0.0
        %v3070 = vadd.f32 %v3068, %v3069
        %3071 = vadd.xlane.f32.xlu0 %v3070
        %v3072 = vpop.xlane.xlu0 %3071
        %v3073 = vrot.slane %v3072, 4
        %v3074 = vadd.f32 %v3072, %v3073
        %v3075 = vrot.slane %v3074, 2
        %v3076 = vadd.f32 %v3074, %v3075
        %v3077 = vrot.slane %v3076, 1
        %v3078 = vadd.f32 %v3076, %v3077
        %s3079 = vtos %v3078
        %v3080 = vstv %s3079
        %3081 = vst [vmem:[%s303] sm:$0x1] %v3080
        %s3082 = sand.u32 %s149, 1
        %s3083 = scalar_lea.sflag [#allocation4], %s3082
        %s3084 = sand.u32 %s149, 1
        %s3085 = smul.addr %s3084, 512
        %s3086 = scalar_lea.vmem [#allocation7], %s3085
        %s3087 = sand.u32 %s175, 1
        %s3088 = scalar_lea.sflag [#allocation9], %s3087
        %s3089 = sand.u32 %s175, 1
        %s3090 = scalar_lea.vmem [#allocation8], %s3089
        // Predicated region
        $region49: #{tpu_custom_call.1} parent=39 // pred_check
          %p3091 = pneg %p159
        $region50: #{tpu_custom_call.1} parent=39 // pred_check_branch
          %3093 = sbr.rel (%p3091) target = $region52
        $region51: #{tpu_custom_call.1} parent=39 // pred_region
          %s3094 = smul.u32 16, %s26
          %3096 = vsyncadd %s3083, 0
          %s3097 = smul.addr %s3094, 4
          %s3098 = smul.addr %s3097, 8
          %s3099 = scalar_lea.hbm %s5, %s3098
          %s3100 = sshll.u32 %s3086, 4
          %s3101 = int_to_ptr.vmem [resolvable:$true] %s3100
          %s3102 = sshll.u32 %s3099, 4
          %s3103 = int_to_ptr.hbm [resolvable:$true] %s3102
          %3108 = dma.vmem_to_hbm [thread:$0]  %s3101, 8192, %s3103, %s3083, 512, 512, 32
        $region52: #{tpu_custom_call.1} parent=39 // pred_fallthru
          _
        // Predicated region
        $region53: #{tpu_custom_call.1} parent=39 // pred_check
          %p3109 = pneg %p185
        $region54: #{tpu_custom_call.1} parent=39 // pred_check_branch
          %3111 = sbr.rel (%p3109) target = $region56
        $region55: #{tpu_custom_call.1} parent=39 // pred_region
          %3113 = vsyncadd %s3088, 0
          %s3114 = scalar_lea.hbm %s6, %s26
          %s3116 = sshll.u32 %s3090, 4
          %s3117 = int_to_ptr.vmem [resolvable:$true] %s3116
          %s3118 = sshll.u32 %s3114, 4
          %s3119 = int_to_ptr.hbm [resolvable:$true] %s3118
          %3121 = dma.vmem_to_hbm [thread:$0]  %s3117, 16, %s3119, %s3088
        $region56: #{tpu_custom_call.1} parent=39 // pred_fallthru
          _
      $region40: #{tpu_custom_call.1} parent=5 // pred_fallthru
        _
      %p3122 = scmp.le.s32.totalorder 2, %s21
      // Predicated region
      $region57: #{tpu_custom_call.1} parent=5 // pred_check
        %p3123 = pneg %p3122
      $region58: #{tpu_custom_call.1} parent=5 // pred_check_branch
        %3125 = sbr.rel (%p3123) target = $region60
      $region59: #{tpu_custom_call.1} parent=5 // pred_region
        %s3126 = ssub.s32 %s21, 2
        // Predicated region
        $region61: #{tpu_custom_call.1} parent=59 // pred_check
          %p3127 = pneg %p165
        $region62: #{tpu_custom_call.1} parent=59 // pred_check_branch
          %3129 = sbr.rel (%p3127) target = $region64
        $region63: #{tpu_custom_call.1} parent=59 // pred_region
          %s3130 = sand.u32 %s150, 1
          %s3131 = scalar_lea.sflag [#allocation4], %s3130
          %s3132 = sand.u32 %s150, 1
          %s3133 = smul.addr %s3132, 512
          %s3134 = scalar_lea.vmem [#allocation7], %s3133
          %3136 = dma.done %s3131, 8192
        $region64: #{tpu_custom_call.1} parent=59 // pred_fallthru
          _
        // Predicated region
        $region65: #{tpu_custom_call.1} parent=59 // pred_check
          %p3137 = pneg %p191
        $region66: #{tpu_custom_call.1} parent=59 // pred_check_branch
          %3139 = sbr.rel (%p3137) target = $region68
        $region67: #{tpu_custom_call.1} parent=59 // pred_region
          %s3140 = sand.u32 %s176, 1
          %s3141 = scalar_lea.sflag [#allocation9], %s3140
          %s3142 = sand.u32 %s176, 1
          %s3143 = scalar_lea.vmem [#allocation8], %s3142
          %3145 = dma.done %s3141, 16
        $region68: #{tpu_custom_call.1} parent=59 // pred_fallthru
          _
      $region60: #{tpu_custom_call.1} parent=5 // pred_fallthru
        _
    $region6: #{tpu_custom_call.1} parent=1 // loop_footer
      %s25 = sadd.s32 1, %s21
    $region7: #{tpu_custom_call.1} parent=1 // loop_footer_branch
      %20 = sbr.rel target = $region3
    $region8: #{tpu_custom_call.1} parent=1 // loop_exit
      _
    %3146 = vsyncpa [#allocation3], 1
    %s3147 = scalar_lea.sflag [#allocation3], 1
    %3148 = vsyncpa %s3147, 1
    %3149 = vsyncpa [#allocation6], 1
    %3150 = vsyncpa [#allocation4], 1
    %s3151 = scalar_lea.sflag [#allocation4], 1
    %3152 = vsyncpa %s3151, 1
    %3153 = vsyncpa [#allocation9], 1
    %s3154 = scalar_lea.sflag [#allocation9], 1
    %3155 = vsyncpa %s3154, 1

</llo_original>
